<compile_context>
chip_gen: v7x
topology: tpu7x:2x2x1
jax: 0.10.0
libtpu: 0.0.40
codegen_flags: <defaults>
</compile_context>

<pallas_src>
import functools

import jax
import jax.numpy as jnp
from jax import lax
from jax.experimental import pallas as pl
from jax.experimental.pallas import tpu as pltpu

K = 7                    # conv kernel size
P = (K - 1) // 2         # padding = 3


def _spatial_attn_kernel(x_ref, w_ref, o_ref, sum_ref, max_ref, *,
                         C, CK, H, W, NB):
    """Grid = (batch_groups, C_chunks); one NB-image group per parallel step.

    x_ref:   (NB, CK, HW) VMEM  lane-dense input chunk
    w_ref:   (2*K*K,)     SMEM  flattened conv weight (PyTorch OIHW order)
    o_ref:   (NB, HW)     VMEM  lane-dense sigmoid(conv(...)) output rows
    sum_ref: (NB, HW) f32 VMEM  running channel sum (scratch)
    max_ref: (NB, HW) f32 VMEM  running channel max (scratch)
    """
    HW = H * W
    ck = pl.program_id(1)
    num_ck = pl.num_programs(1)

    # ---- channel reduction (dominant cost), lane-dense over the last dim ----
    xb = x_ref[...]                                        # (NB, CK, HW)
    if C % CK != 0:
        # Last chunk is padded past C: mask the invalid (garbage) channels.
        cidx = lax.broadcasted_iota(jnp.int32, (1, CK, 1), 1)
        valid = (cidx + ck * CK) < C
        xs = jnp.where(valid, xb, jnp.zeros([], xb.dtype)).astype(jnp.float32)
        xm = jnp.where(valid, xb, jnp.full([], -jnp.inf, xb.dtype))
    else:
        xs = xb.astype(jnp.float32)
        xm = xb
    part_sum = jnp.sum(xs, axis=1)                         # (NB, HW) f32
    part_max = jnp.max(xm, axis=1).astype(jnp.float32)     # exact in native dtype

    @pl.when(ck == 0)
    def _():
        sum_ref[...] = part_sum
        max_ref[...] = part_max

    @pl.when(ck > 0)
    def _():
        sum_ref[...] = sum_ref[...] + part_sum
        max_ref[...] = jnp.maximum(max_ref[...], part_max)

    # ---- 7x7 conv (2 -> 1 channels) + sigmoid, on the last C chunk only ----
    @pl.when(ck == num_ck - 1)
    def _():
        avg = sum_ref[...] * (1.0 / C)                     # (NB, HW) mean
        mx = max_ref[...]                                  # (NB, HW) max

        jidx = lax.broadcasted_iota(jnp.int32, (1, HW), 1)   # flat index j
        if (W & (W - 1)) == 0:
            col = jidx & (W - 1)                             # j % W, W power of 2
        else:
            col = jidx % W

        # 7 row-rolled copies (shift by dh*W keeps the column index) with the
        # row-validity mask (== zero padding) applied once as an f32 multiply.
        a_rows, m_rows = [], []
        for kh in range(K):
            dh = kh - P
            rmask = jnp.where((jidx >= max(0, -dh) * W) &
                              (jidx < min(H, H - dh) * W), 1.0, 0.0)
            shift = (-dh * W) % HW
            a_s = pltpu.roll(avg, shift=shift, axis=1) if shift else avg
            m_s = pltpu.roll(mx, shift=shift, axis=1) if shift else mx
            a_rows.append(a_s * rmask)
            m_rows.append(m_s * rmask)

        # Per-kw weighted sums over kh (pure FMAs, no masks/selects), then
        # one column roll + one f32 column-mask multiply per kw.
        accs = [jnp.zeros((NB, HW), jnp.float32) for _ in range(2)]
        for kw in range(K):
            dw = kw - P
            cmask = jnp.where((col >= max(0, -dw)) &
                              (col < min(W, W - dw)), 1.0, 0.0)
            s = a_rows[0] * w_ref[kw] + m_rows[0] * w_ref[K * K + kw]
            for kh in range(1, K):
                s = (s + a_rows[kh] * w_ref[kh * K + kw]
                       + m_rows[kh] * w_ref[K * K + kh * K + kw])
            shift = (-dw) % HW
            if shift:
                s = pltpu.roll(s, shift=shift, axis=1)
            accs[kw % 2] = accs[kw % 2] + s * cmask

        acc = accs[0] + accs[1]
        o_ref[...] = jax.nn.sigmoid(acc).astype(o_ref.dtype)


def _vmem_budget_bytes():
    cap = 64 << 20
    try:
        cap = int(pltpu.get_tpu_info().vmem_capacity_bytes)
    except Exception:
        pass
    # ~54 MiB usable on 64 MiB parts (v7x), ~108 MiB on 128 MiB parts (v5e/v6e).
    return max(min(cap - (8 << 20), int(cap * 0.85)), 16 << 20)


def spatial_attention(x, weight):
    """x: (N, C, H, W); weight: (1, 2, K, K) -> (N, 1, H, W) attention map."""
    N, C, H, W = x.shape
    HW = H * W

    x_flat = x.reshape(N, C, HW)                      # metadata-only reshape
    w_flat = weight.astype(jnp.float32).reshape(-1)   # (2*K*K,) scalars -> SMEM

    NB = min(8, N)                                    # sublane-fill the conv stage
    num_bg = pl.cdiv(N, NB)

    itemsize = jnp.dtype(x.dtype).itemsize
    budget = _vmem_budget_bytes()
    # Per-step costs independent of CK: f32 conv temporaries (~26 x (NB,HW)),
    # double-buffered output block, scratch, misc slack.
    fixed = NB * HW * 4 * 26 + 2 * NB * HW * itemsize + (2 << 20)
    # Per-channel cost: double-buffered input block + its f32 cast.
    per_c = NB * HW * (2 * itemsize + 4)
    if fixed + per_c * C <= budget:
        CK = C
    else:
        avail = max(budget - fixed, 0)
        CK = min(C, max(8, (avail // per_c) // 8 * 8))   # multiple of 8 (or == C)
    num_ck = pl.cdiv(C, CK)
    need = fixed + per_c * CK
    vmem_limit = int(max(min(budget, need + (8 << 20)), 16 << 20))

    kernel = functools.partial(_spatial_attn_kernel, C=C, CK=CK, H=H, W=W, NB=NB)

    out_flat = pl.pallas_call(
        kernel,
        out_shape=jax.ShapeDtypeStruct((N, HW), x.dtype),
        grid=(num_bg, num_ck),
        in_specs=[
            pl.BlockSpec((NB, CK, HW), lambda bg, ck: (bg, ck, 0)),
            pl.BlockSpec(memory_space=pltpu.MemorySpace.SMEM),
        ],
        out_specs=pl.BlockSpec((NB, HW), lambda bg, ck: (bg, 0)),
        scratch_shapes=[
            pltpu.VMEM((NB, HW), jnp.float32),   # running channel sum
            pltpu.VMEM((NB, HW), jnp.float32),   # running channel max
        ],
        compiler_params=pltpu.CompilerParams(
            dimension_semantics=("parallel", "arbitrary"),
            vmem_limit_bytes=vmem_limit,
        ),
    )(x_flat, w_flat)

    return out_flat.reshape(N, 1, H, W)


def _reference(x, weight):
    avg_out = jnp.mean(x, axis=1, keepdims=True)
    max_out = jnp.max(x, axis=1, keepdims=True)
    cat = jnp.concatenate([avg_out, max_out], axis=1)
    conv = jax.lax.conv_general_dilated(
        cat, weight, window_strides=(1, 1), padding=((P, P), (P, P)),
        dimension_numbers=("NCHW", "OIHW", "NCHW"))
    return jax.nn.sigmoid(conv)


if __name__ == "__main__":
    key = jax.random.PRNGKey(0)
    kx, kw_key = jax.random.split(key)

    N, C, H, W = 2, 4, 16, 16
    x = jax.random.normal(kx, (N, C, H, W), dtype=jnp.float32)
    # Deterministic conv weight (PyTorch shape: out=1, in=2, K, K), no bias.
    weight = jax.random.normal(kw_key, (1, 2, K, K), dtype=jnp.float32) * 0.05

    out = spatial_attention(x, weight)
    out = jax.block_until_ready(out)

    ref = _reference(x, weight)
    assert out.shape == (N, 1, H, W)
    assert jnp.allclose(out, ref, atol=1e-5, rtol=1e-5)

    print("KERNEL_OK")
</pallas_src>

<mosaic_0001>
module attributes {stable_mosaic.version = 11 : i64} {
  func.func @_spatial_attn_kernel(%arg0: i32, %arg1: i32, %arg2: memref<2x4x256xf32, #tpu.memory_space<vmem>>, %arg3: memref<98xf32, #tpu.memory_space<smem>>, %arg4: memref<2x256xf32, #tpu.memory_space<vmem>>, %arg5: memref<2x256xf32, #tpu.memory_space<vmem>>, %arg6: memref<2x256xf32, #tpu.memory_space<vmem>>) attributes {dimension_semantics = [#tpu.dimension_semantics<parallel>, #tpu.dimension_semantics<arbitrary>], iteration_bounds = array<i64: 1, 1>, scalar_prefetch = 0 : i64, scratch_operands = 2 : i64, tpu.core_type = #tpu.core_type<tc>, window_params = [{transform_indices = @transform_0, window_bounds = array<i64: 2, 4, 256>}, {transform_indices = @transform_1, window_bounds = array<i64: 98>}, {transform_indices = @transform_2, window_bounds = array<i64: 2, 256>}]} {
    %c0 = arith.constant 0 : index
    %c0_0 = arith.constant 0 : index
    %c0_1 = arith.constant 0 : index
    %0 = vector.load %arg2[%c0, %c0_0, %c0_1] : memref<2x4x256xf32, #tpu.memory_space<vmem>>, vector<2x4x256xf32>
    %cst = arith.constant dense<0.000000e+00> : vector<2x256xf32>
    %1 = vector.multi_reduction <add>, %0, %cst [1] : vector<2x4x256xf32> to vector<2x256xf32>
    %cst_2 = arith.constant dense<0xFF800000> : vector<2x256xf32>
    %2 = vector.multi_reduction <maximumf>, %0, %cst_2 [1] : vector<2x4x256xf32> to vector<2x256xf32>
    %c0_i32 = arith.constant 0 : i32
    %3 = arith.cmpi eq, %arg1, %c0_i32 : i32
    %4 = arith.extui %3 : i1 to i32
    %c0_i32_3 = arith.constant 0 : i32
    %5 = arith.cmpi ne, %4, %c0_i32_3 : i32
    scf.if %5 {
      %c0_8 = arith.constant 0 : index
      %c0_9 = arith.constant 0 : index
      %12 = vector.load %arg5[%c0_8, %c0_9] : memref<2x256xf32, #tpu.memory_space<vmem>>, vector<2x256xf32>
      tpu.vector_store %arg5[%c0_8, %c0_9], %1 {strides = array<i32>} : memref<2x256xf32, #tpu.memory_space<vmem>>, vector<2x256xf32>,
      %c0_10 = arith.constant 0 : index
      %c0_11 = arith.constant 0 : index
      %13 = vector.load %arg6[%c0_10, %c0_11] : memref<2x256xf32, #tpu.memory_space<vmem>>, vector<2x256xf32>
      tpu.vector_store %arg6[%c0_10, %c0_11], %2 {strides = array<i32>} : memref<2x256xf32, #tpu.memory_space<vmem>>, vector<2x256xf32>,
    } else {
    }
    %c0_i32_4 = arith.constant 0 : i32
    %6 = arith.cmpi sgt, %arg1, %c0_i32_4 : i32
    %7 = arith.extui %6 : i1 to i32
    %c0_i32_5 = arith.constant 0 : i32
    %8 = arith.cmpi ne, %7, %c0_i32_5 : i32
    scf.if %8 {
      %c0_8 = arith.constant 0 : index
      %c0_9 = arith.constant 0 : index
      %12 = vector.load %arg5[%c0_8, %c0_9] : memref<2x256xf32, #tpu.memory_space<vmem>>, vector<2x256xf32>
      %13 = arith.addf %12, %1 : vector<2x256xf32>
      %c0_10 = arith.constant 0 : index
      %c0_11 = arith.constant 0 : index
      %14 = vector.load %arg5[%c0_10, %c0_11] : memref<2x256xf32, #tpu.memory_space<vmem>>, vector<2x256xf32>
      tpu.vector_store %arg5[%c0_10, %c0_11], %13 {strides = array<i32>} : memref<2x256xf32, #tpu.memory_space<vmem>>, vector<2x256xf32>,
      %c0_12 = arith.constant 0 : index
      %c0_13 = arith.constant 0 : index
      %15 = vector.load %arg6[%c0_12, %c0_13] : memref<2x256xf32, #tpu.memory_space<vmem>>, vector<2x256xf32>
      %16 = arith.maximumf %15, %2 : vector<2x256xf32>
      %c0_14 = arith.constant 0 : index
      %c0_15 = arith.constant 0 : index
      %17 = vector.load %arg6[%c0_14, %c0_15] : memref<2x256xf32, #tpu.memory_space<vmem>>, vector<2x256xf32>
      tpu.vector_store %arg6[%c0_14, %c0_15], %16 {strides = array<i32>} : memref<2x256xf32, #tpu.memory_space<vmem>>, vector<2x256xf32>,
    } else {
    }
    %c0_i32_6 = arith.constant 0 : i32
    %9 = arith.cmpi eq, %arg1, %c0_i32_6 : i32
    %10 = arith.extui %9 : i1 to i32
    %c0_i32_7 = arith.constant 0 : i32
    %11 = arith.cmpi ne, %10, %c0_i32_7 : i32
    scf.if %11 {
      %c0_8 = arith.constant 0 : index
      %c0_9 = arith.constant 0 : index
      %12 = vector.load %arg5[%c0_8, %c0_9] : memref<2x256xf32, #tpu.memory_space<vmem>>, vector<2x256xf32>
      %cst_10 = arith.constant 2.500000e-01 : f32
      %13 = vector.broadcast %cst_10 : f32 to vector<2x256xf32>
      %14 = arith.mulf %12, %13 : vector<2x256xf32>
      %c0_11 = arith.constant 0 : index
      %c0_12 = arith.constant 0 : index
      %15 = vector.load %arg6[%c0_11, %c0_12] : memref<2x256xf32, #tpu.memory_space<vmem>>, vector<2x256xf32>
      %16 = tpu.iota {dimensions = array<i32: 1>} : vector<1x256xi32>
      %c15_i32 = arith.constant 15 : i32
      %17 = vector.broadcast %c15_i32 : i32 to vector<1x256xi32>
      %18 = arith.andi %16, %17 : vector<1x256xi32>
      %c48_i32 = arith.constant 48 : i32
      %19 = vector.broadcast %c48_i32 : i32 to vector<1x256xi32>
      %20 = arith.cmpi sge, %16, %19 : vector<1x256xi32>
      %c256_i32 = arith.constant 256 : i32
      %21 = vector.broadcast %c256_i32 : i32 to vector<1x256xi32>
      %22 = arith.cmpi slt, %16, %21 : vector<1x256xi32>
      %23 = arith.andi %20, %22 : vector<1x256xi1>
      %cst_13 = arith.constant 1.000000e+00 : f32
      %cst_14 = arith.constant 0.000000e+00 : f32
      %24 = vector.broadcast %cst_13 : f32 to vector<1x256xf32>
      %25 = vector.broadcast %cst_14 : f32 to vector<1x256xf32>
      %26 = arith.select %23, %24, %25 : vector<1x256xi1>, vector<1x256xf32>
      %c48_i32_15 = arith.constant 48 : i32
      %27 = tpu.dynamic_rotate %14 by %c48_i32_15 dim 1 : vector<2x256xf32>, i32 -> vector<2x256xf32>
      %c48_i32_16 = arith.constant 48 : i32
      %28 = tpu.dynamic_rotate %15 by %c48_i32_16 dim 1 : vector<2x256xf32>, i32 -> vector<2x256xf32>
      %29 = vector.broadcast %26 : vector<1x256xf32> to vector<2x256xf32>
      %30 = arith.mulf %27, %29 : vector<2x256xf32>
      %31 = vector.broadcast %26 : vector<1x256xf32> to vector<2x256xf32>
      %32 = arith.mulf %28, %31 : vector<2x256xf32>
      %c32_i32 = arith.constant 32 : i32
      %33 = vector.broadcast %c32_i32 : i32 to vector<1x256xi32>
      %34 = arith.cmpi sge, %16, %33 : vector<1x256xi32>
      %c256_i32_17 = arith.constant 256 : i32
      %35 = vector.broadcast %c256_i32_17 : i32 to vector<1x256xi32>
      %36 = arith.cmpi slt, %16, %35 : vector<1x256xi32>
      %37 = arith.andi %34, %36 : vector<1x256xi1>
      %cst_18 = arith.constant 1.000000e+00 : f32
      %cst_19 = arith.constant 0.000000e+00 : f32
      %38 = vector.broadcast %cst_18 : f32 to vector<1x256xf32>
      %39 = vector.broadcast %cst_19 : f32 to vector<1x256xf32>
      %40 = arith.select %37, %38, %39 : vector<1x256xi1>, vector<1x256xf32>
      %c32_i32_20 = arith.constant 32 : i32
      %41 = tpu.dynamic_rotate %14 by %c32_i32_20 dim 1 : vector<2x256xf32>, i32 -> vector<2x256xf32>
      %c32_i32_21 = arith.constant 32 : i32
      %42 = tpu.dynamic_rotate %15 by %c32_i32_21 dim 1 : vector<2x256xf32>, i32 -> vector<2x256xf32>
      %43 = vector.broadcast %40 : vector<1x256xf32> to vector<2x256xf32>
      %44 = arith.mulf %41, %43 : vector<2x256xf32>
      %45 = vector.broadcast %40 : vector<1x256xf32> to vector<2x256xf32>
      %46 = arith.mulf %42, %45 : vector<2x256xf32>
      %c16_i32 = arith.constant 16 : i32
      %47 = vector.broadcast %c16_i32 : i32 to vector<1x256xi32>
      %48 = arith.cmpi sge, %16, %47 : vector<1x256xi32>
      %c256_i32_22 = arith.constant 256 : i32
      %49 = vector.broadcast %c256_i32_22 : i32 to vector<1x256xi32>
      %50 = arith.cmpi slt, %16, %49 : vector<1x256xi32>
      %51 = arith.andi %48, %50 : vector<1x256xi1>
      %cst_23 = arith.constant 1.000000e+00 : f32
      %cst_24 = arith.constant 0.000000e+00 : f32
      %52 = vector.broadcast %cst_23 : f32 to vector<1x256xf32>
      %53 = vector.broadcast %cst_24 : f32 to vector<1x256xf32>
      %54 = arith.select %51, %52, %53 : vector<1x256xi1>, vector<1x256xf32>
      %c16_i32_25 = arith.constant 16 : i32
      %55 = tpu.dynamic_rotate %14 by %c16_i32_25 dim 1 : vector<2x256xf32>, i32 -> vector<2x256xf32>
      %c16_i32_26 = arith.constant 16 : i32
      %56 = tpu.dynamic_rotate %15 by %c16_i32_26 dim 1 : vector<2x256xf32>, i32 -> vector<2x256xf32>
      %57 = vector.broadcast %54 : vector<1x256xf32> to vector<2x256xf32>
      %58 = arith.mulf %55, %57 : vector<2x256xf32>
      %59 = vector.broadcast %54 : vector<1x256xf32> to vector<2x256xf32>
      %60 = arith.mulf %56, %59 : vector<2x256xf32>
      %c0_i32_27 = arith.constant 0 : i32
      %61 = vector.broadcast %c0_i32_27 : i32 to vector<1x256xi32>
      %62 = arith.cmpi sge, %16, %61 : vector<1x256xi32>
      %c256_i32_28 = arith.constant 256 : i32
      %63 = vector.broadcast %c256_i32_28 : i32 to vector<1x256xi32>
      %64 = arith.cmpi slt, %16, %63 : vector<1x256xi32>
      %65 = arith.andi %62, %64 : vector<1x256xi1>
      %cst_29 = arith.constant 1.000000e+00 : f32
      %cst_30 = arith.constant 0.000000e+00 : f32
      %66 = vector.broadcast %cst_29 : f32 to vector<1x256xf32>
      %67 = vector.broadcast %cst_30 : f32 to vector<1x256xf32>
      %68 = arith.select %65, %66, %67 : vector<1x256xi1>, vector<1x256xf32>
      %69 = vector.broadcast %68 : vector<1x256xf32> to vector<2x256xf32>
      %70 = arith.mulf %14, %69 : vector<2x256xf32>
      %71 = vector.broadcast %68 : vector<1x256xf32> to vector<2x256xf32>
      %72 = arith.mulf %15, %71 : vector<2x256xf32>
      %c0_i32_31 = arith.constant 0 : i32
      %73 = vector.broadcast %c0_i32_31 : i32 to vector<1x256xi32>
      %74 = arith.cmpi sge, %16, %73 : vector<1x256xi32>
      %c240_i32 = arith.constant 240 : i32
      %75 = vector.broadcast %c240_i32 : i32 to vector<1x256xi32>
      %76 = arith.cmpi slt, %16, %75 : vector<1x256xi32>
      %77 = arith.andi %74, %76 : vector<1x256xi1>
      %cst_32 = arith.constant 1.000000e+00 : f32
      %cst_33 = arith.constant 0.000000e+00 : f32
      %78 = vector.broadcast %cst_32 : f32 to vector<1x256xf32>
      %79 = vector.broadcast %cst_33 : f32 to vector<1x256xf32>
      %80 = arith.select %77, %78, %79 : vector<1x256xi1>, vector<1x256xf32>
      %c240_i32_34 = arith.constant 240 : i32
      %81 = tpu.dynamic_rotate %14 by %c240_i32_34 dim 1 : vector<2x256xf32>, i32 -> vector<2x256xf32>
      %c240_i32_35 = arith.constant 240 : i32
      %82 = tpu.dynamic_rotate %15 by %c240_i32_35 dim 1 : vector<2x256xf32>, i32 -> vector<2x256xf32>
      %83 = vector.broadcast %80 : vector<1x256xf32> to vector<2x256xf32>
      %84 = arith.mulf %81, %83 : vector<2x256xf32>
      %85 = vector.broadcast %80 : vector<1x256xf32> to vector<2x256xf32>
      %86 = arith.mulf %82, %85 : vector<2x256xf32>
      %c0_i32_36 = arith.constant 0 : i32
      %87 = vector.broadcast %c0_i32_36 : i32 to vector<1x256xi32>
      %88 = arith.cmpi sge, %16, %87 : vector<1x256xi32>
      %c224_i32 = arith.constant 224 : i32
      %89 = vector.broadcast %c224_i32 : i32 to vector<1x256xi32>
      %90 = arith.cmpi slt, %16, %89 : vector<1x256xi32>
      %91 = arith.andi %88, %90 : vector<1x256xi1>
      %cst_37 = arith.constant 1.000000e+00 : f32
      %cst_38 = arith.constant 0.000000e+00 : f32
      %92 = vector.broadcast %cst_37 : f32 to vector<1x256xf32>
      %93 = vector.broadcast %cst_38 : f32 to vector<1x256xf32>
      %94 = arith.select %91, %92, %93 : vector<1x256xi1>, vector<1x256xf32>
      %c224_i32_39 = arith.constant 224 : i32
      %95 = tpu.dynamic_rotate %14 by %c224_i32_39 dim 1 : vector<2x256xf32>, i32 -> vector<2x256xf32>
      %c224_i32_40 = arith.constant 224 : i32
      %96 = tpu.dynamic_rotate %15 by %c224_i32_40 dim 1 : vector<2x256xf32>, i32 -> vector<2x256xf32>
      %97 = vector.broadcast %94 : vector<1x256xf32> to vector<2x256xf32>
      %98 = arith.mulf %95, %97 : vector<2x256xf32>
      %99 = vector.broadcast %94 : vector<1x256xf32> to vector<2x256xf32>
      %100 = arith.mulf %96, %99 : vector<2x256xf32>
      %c0_i32_41 = arith.constant 0 : i32
      %101 = vector.broadcast %c0_i32_41 : i32 to vector<1x256xi32>
      %102 = arith.cmpi sge, %16, %101 : vector<1x256xi32>
      %c208_i32 = arith.constant 208 : i32
      %103 = vector.broadcast %c208_i32 : i32 to vector<1x256xi32>
      %104 = arith.cmpi slt, %16, %103 : vector<1x256xi32>
      %105 = arith.andi %102, %104 : vector<1x256xi1>
      %cst_42 = arith.constant 1.000000e+00 : f32
      %cst_43 = arith.constant 0.000000e+00 : f32
      %106 = vector.broadcast %cst_42 : f32 to vector<1x256xf32>
      %107 = vector.broadcast %cst_43 : f32 to vector<1x256xf32>
      %108 = arith.select %105, %106, %107 : vector<1x256xi1>, vector<1x256xf32>
      %c208_i32_44 = arith.constant 208 : i32
      %109 = tpu.dynamic_rotate %14 by %c208_i32_44 dim 1 : vector<2x256xf32>, i32 -> vector<2x256xf32>
      %c208_i32_45 = arith.constant 208 : i32
      %110 = tpu.dynamic_rotate %15 by %c208_i32_45 dim 1 : vector<2x256xf32>, i32 -> vector<2x256xf32>
      %111 = vector.broadcast %108 : vector<1x256xf32> to vector<2x256xf32>
      %112 = arith.mulf %109, %111 : vector<2x256xf32>
      %113 = vector.broadcast %108 : vector<1x256xf32> to vector<2x256xf32>
      %114 = arith.mulf %110, %113 : vector<2x256xf32>
      %cst_46 = arith.constant 0.000000e+00 : f32
      %115 = vector.broadcast %cst_46 : f32 to vector<2x256xf32>
      %cst_47 = arith.constant 0.000000e+00 : f32
      %116 = vector.broadcast %cst_47 : f32 to vector<2x256xf32>
      %c3_i32 = arith.constant 3 : i32
      %117 = vector.broadcast %c3_i32 : i32 to vector<1x256xi32>
      %118 = arith.cmpi sge, %18, %117 : vector<1x256xi32>
      %c16_i32_48 = arith.constant 16 : i32
      %119 = vector.broadcast %c16_i32_48 : i32 to vector<1x256xi32>
      %120 = arith.cmpi slt, %18, %119 : vector<1x256xi32>
      %121 = arith.andi %118, %120 : vector<1x256xi1>
      %cst_49 = arith.constant 1.000000e+00 : f32
      %cst_50 = arith.constant 0.000000e+00 : f32
      %122 = vector.broadcast %cst_49 : f32 to vector<1x256xf32>
      %123 = vector.broadcast %cst_50 : f32 to vector<1x256xf32>
      %124 = arith.select %121, %122, %123 : vector<1x256xi1>, vector<1x256xf32>
      %c0_51 = arith.constant 0 : index
      %125 = memref.load %arg3[%c0_51] : memref<98xf32, #tpu.memory_space<smem>>
      %126 = vector.broadcast %125 : f32 to vector<2x256xf32>
      %127 = arith.mulf %30, %126 : vector<2x256xf32>
      %c49 = arith.constant 49 : index
      %128 = memref.load %arg3[%c49] : memref<98xf32, #tpu.memory_space<smem>>
      %129 = vector.broadcast %128 : f32 to vector<2x256xf32>
      %130 = arith.mulf %32, %129 : vector<2x256xf32>
      %131 = arith.addf %127, %130 : vector<2x256xf32>
      %c7 = arith.constant 7 : index
      %132 = memref.load %arg3[%c7] : memref<98xf32, #tpu.memory_space<smem>>
      %133 = vector.broadcast %132 : f32 to vector<2x256xf32>
      %134 = arith.mulf %44, %133 : vector<2x256xf32>
      %135 = arith.addf %131, %134 : vector<2x256xf32>
      %c56 = arith.constant 56 : index
      %136 = memref.load %arg3[%c56] : memref<98xf32, #tpu.memory_space<smem>>
      %137 = vector.broadcast %136 : f32 to vector<2x256xf32>
      %138 = arith.mulf %46, %137 : vector<2x256xf32>
      %139 = arith.addf %135, %138 : vector<2x256xf32>
      %c14 = arith.constant 14 : index
      %140 = memref.load %arg3[%c14] : memref<98xf32, #tpu.memory_space<smem>>
      %141 = vector.broadcast %140 : f32 to vector<2x256xf32>
      %142 = arith.mulf %58, %141 : vector<2x256xf32>
      %143 = arith.addf %139, %142 : vector<2x256xf32>
      %c63 = arith.constant 63 : index
      %144 = memref.load %arg3[%c63] : memref<98xf32, #tpu.memory_space<smem>>
      %145 = vector.broadcast %144 : f32 to vector<2x256xf32>
      %146 = arith.mulf %60, %145 : vector<2x256xf32>
      %147 = arith.addf %143, %146 : vector<2x256xf32>
      %c21 = arith.constant 21 : index
      %148 = memref.load %arg3[%c21] : memref<98xf32, #tpu.memory_space<smem>>
      %149 = vector.broadcast %148 : f32 to vector<2x256xf32>
      %150 = arith.mulf %70, %149 : vector<2x256xf32>
      %151 = arith.addf %147, %150 : vector<2x256xf32>
      %c70 = arith.constant 70 : index
      %152 = memref.load %arg3[%c70] : memref<98xf32, #tpu.memory_space<smem>>
      %153 = vector.broadcast %152 : f32 to vector<2x256xf32>
      %154 = arith.mulf %72, %153 : vector<2x256xf32>
      %155 = arith.addf %151, %154 : vector<2x256xf32>
      %c28 = arith.constant 28 : index
      %156 = memref.load %arg3[%c28] : memref<98xf32, #tpu.memory_space<smem>>
      %157 = vector.broadcast %156 : f32 to vector<2x256xf32>
      %158 = arith.mulf %84, %157 : vector<2x256xf32>
      %159 = arith.addf %155, %158 : vector<2x256xf32>
      %c77 = arith.constant 77 : index
      %160 = memref.load %arg3[%c77] : memref<98xf32, #tpu.memory_space<smem>>
      %161 = vector.broadcast %160 : f32 to vector<2x256xf32>
      %162 = arith.mulf %86, %161 : vector<2x256xf32>
      %163 = arith.addf %159, %162 : vector<2x256xf32>
      %c35 = arith.constant 35 : index
      %164 = memref.load %arg3[%c35] : memref<98xf32, #tpu.memory_space<smem>>
      %165 = vector.broadcast %164 : f32 to vector<2x256xf32>
      %166 = arith.mulf %98, %165 : vector<2x256xf32>
      %167 = arith.addf %163, %166 : vector<2x256xf32>
      %c84 = arith.constant 84 : index
      %168 = memref.load %arg3[%c84] : memref<98xf32, #tpu.memory_space<smem>>
      %169 = vector.broadcast %168 : f32 to vector<2x256xf32>
      %170 = arith.mulf %100, %169 : vector<2x256xf32>
      %171 = arith.addf %167, %170 : vector<2x256xf32>
      %c42 = arith.constant 42 : index
      %172 = memref.load %arg3[%c42] : memref<98xf32, #tpu.memory_space<smem>>
      %173 = vector.broadcast %172 : f32 to vector<2x256xf32>
      %174 = arith.mulf %112, %173 : vector<2x256xf32>
      %175 = arith.addf %171, %174 : vector<2x256xf32>
      %c91 = arith.constant 91 : index
      %176 = memref.load %arg3[%c91] : memref<98xf32, #tpu.memory_space<smem>>
      %177 = vector.broadcast %176 : f32 to vector<2x256xf32>
      %178 = arith.mulf %114, %177 : vector<2x256xf32>
      %179 = arith.addf %175, %178 : vector<2x256xf32>
      %c3_i32_52 = arith.constant 3 : i32
      %180 = tpu.dynamic_rotate %179 by %c3_i32_52 dim 1 : vector<2x256xf32>, i32 -> vector<2x256xf32>
      %181 = vector.broadcast %124 : vector<1x256xf32> to vector<2x256xf32>
      %182 = arith.mulf %180, %181 : vector<2x256xf32>
      %183 = arith.addf %115, %182 : vector<2x256xf32>
      %c2_i32 = arith.constant 2 : i32
      %184 = vector.broadcast %c2_i32 : i32 to vector<1x256xi32>
      %185 = arith.cmpi sge, %18, %184 : vector<1x256xi32>
      %c16_i32_53 = arith.constant 16 : i32
      %186 = vector.broadcast %c16_i32_53 : i32 to vector<1x256xi32>
      %187 = arith.cmpi slt, %18, %186 : vector<1x256xi32>
      %188 = arith.andi %185, %187 : vector<1x256xi1>
      %cst_54 = arith.constant 1.000000e+00 : f32
      %cst_55 = arith.constant 0.000000e+00 : f32
      %189 = vector.broadcast %cst_54 : f32 to vector<1x256xf32>
      %190 = vector.broadcast %cst_55 : f32 to vector<1x256xf32>
      %191 = arith.select %188, %189, %190 : vector<1x256xi1>, vector<1x256xf32>
      %c1 = arith.constant 1 : index
      %192 = memref.load %arg3[%c1] : memref<98xf32, #tpu.memory_space<smem>>
      %193 = vector.broadcast %192 : f32 to vector<2x256xf32>
      %194 = arith.mulf %30, %193 : vector<2x256xf32>
      %c50 = arith.constant 50 : index
      %195 = memref.load %arg3[%c50] : memref<98xf32, #tpu.memory_space<smem>>
      %196 = vector.broadcast %195 : f32 to vector<2x256xf32>
      %197 = arith.mulf %32, %196 : vector<2x256xf32>
      %198 = arith.addf %194, %197 : vector<2x256xf32>
      %c8 = arith.constant 8 : index
      %199 = memref.load %arg3[%c8] : memref<98xf32, #tpu.memory_space<smem>>
      %200 = vector.broadcast %199 : f32 to vector<2x256xf32>
      %201 = arith.mulf %44, %200 : vector<2x256xf32>
      %202 = arith.addf %198, %201 : vector<2x256xf32>
      %c57 = arith.constant 57 : index
      %203 = memref.load %arg3[%c57] : memref<98xf32, #tpu.memory_space<smem>>
      %204 = vector.broadcast %203 : f32 to vector<2x256xf32>
      %205 = arith.mulf %46, %204 : vector<2x256xf32>
      %206 = arith.addf %202, %205 : vector<2x256xf32>
      %c15 = arith.constant 15 : index
      %207 = memref.load %arg3[%c15] : memref<98xf32, #tpu.memory_space<smem>>
      %208 = vector.broadcast %207 : f32 to vector<2x256xf32>
      %209 = arith.mulf %58, %208 : vector<2x256xf32>
      %210 = arith.addf %206, %209 : vector<2x256xf32>
      %c64 = arith.constant 64 : index
      %211 = memref.load %arg3[%c64] : memref<98xf32, #tpu.memory_space<smem>>
      %212 = vector.broadcast %211 : f32 to vector<2x256xf32>
      %213 = arith.mulf %60, %212 : vector<2x256xf32>
      %214 = arith.addf %210, %213 : vector<2x256xf32>
      %c22 = arith.constant 22 : index
      %215 = memref.load %arg3[%c22] : memref<98xf32, #tpu.memory_space<smem>>
      %216 = vector.broadcast %215 : f32 to vector<2x256xf32>
      %217 = arith.mulf %70, %216 : vector<2x256xf32>
      %218 = arith.addf %214, %217 : vector<2x256xf32>
      %c71 = arith.constant 71 : index
      %219 = memref.load %arg3[%c71] : memref<98xf32, #tpu.memory_space<smem>>
      %220 = vector.broadcast %219 : f32 to vector<2x256xf32>
      %221 = arith.mulf %72, %220 : vector<2x256xf32>
      %222 = arith.addf %218, %221 : vector<2x256xf32>
      %c29 = arith.constant 29 : index
      %223 = memref.load %arg3[%c29] : memref<98xf32, #tpu.memory_space<smem>>
      %224 = vector.broadcast %223 : f32 to vector<2x256xf32>
      %225 = arith.mulf %84, %224 : vector<2x256xf32>
      %226 = arith.addf %222, %225 : vector<2x256xf32>
      %c78 = arith.constant 78 : index
      %227 = memref.load %arg3[%c78] : memref<98xf32, #tpu.memory_space<smem>>
      %228 = vector.broadcast %227 : f32 to vector<2x256xf32>
      %229 = arith.mulf %86, %228 : vector<2x256xf32>
      %230 = arith.addf %226, %229 : vector<2x256xf32>
      %c36 = arith.constant 36 : index
      %231 = memref.load %arg3[%c36] : memref<98xf32, #tpu.memory_space<smem>>
      %232 = vector.broadcast %231 : f32 to vector<2x256xf32>
      %233 = arith.mulf %98, %232 : vector<2x256xf32>
      %234 = arith.addf %230, %233 : vector<2x256xf32>
      %c85 = arith.constant 85 : index
      %235 = memref.load %arg3[%c85] : memref<98xf32, #tpu.memory_space<smem>>
      %236 = vector.broadcast %235 : f32 to vector<2x256xf32>
      %237 = arith.mulf %100, %236 : vector<2x256xf32>
      %238 = arith.addf %234, %237 : vector<2x256xf32>
      %c43 = arith.constant 43 : index
      %239 = memref.load %arg3[%c43] : memref<98xf32, #tpu.memory_space<smem>>
      %240 = vector.broadcast %239 : f32 to vector<2x256xf32>
      %241 = arith.mulf %112, %240 : vector<2x256xf32>
      %242 = arith.addf %238, %241 : vector<2x256xf32>
      %c92 = arith.constant 92 : index
      %243 = memref.load %arg3[%c92] : memref<98xf32, #tpu.memory_space<smem>>
      %244 = vector.broadcast %243 : f32 to vector<2x256xf32>
      %245 = arith.mulf %114, %244 : vector<2x256xf32>
      %246 = arith.addf %242, %245 : vector<2x256xf32>
      %c2_i32_56 = arith.constant 2 : i32
      %247 = tpu.dynamic_rotate %246 by %c2_i32_56 dim 1 : vector<2x256xf32>, i32 -> vector<2x256xf32>
      %248 = vector.broadcast %191 : vector<1x256xf32> to vector<2x256xf32>
      %249 = arith.mulf %247, %248 : vector<2x256xf32>
      %250 = arith.addf %116, %249 : vector<2x256xf32>
      %c1_i32 = arith.constant 1 : i32
      %251 = vector.broadcast %c1_i32 : i32 to vector<1x256xi32>
      %252 = arith.cmpi sge, %18, %251 : vector<1x256xi32>
      %c16_i32_57 = arith.constant 16 : i32
      %253 = vector.broadcast %c16_i32_57 : i32 to vector<1x256xi32>
      %254 = arith.cmpi slt, %18, %253 : vector<1x256xi32>
      %255 = arith.andi %252, %254 : vector<1x256xi1>
      %cst_58 = arith.constant 1.000000e+00 : f32
      %cst_59 = arith.constant 0.000000e+00 : f32
      %256 = vector.broadcast %cst_58 : f32 to vector<1x256xf32>
      %257 = vector.broadcast %cst_59 : f32 to vector<1x256xf32>
      %258 = arith.select %255, %256, %257 : vector<1x256xi1>, vector<1x256xf32>
      %c2 = arith.constant 2 : index
      %259 = memref.load %arg3[%c2] : memref<98xf32, #tpu.memory_space<smem>>
      %260 = vector.broadcast %259 : f32 to vector<2x256xf32>
      %261 = arith.mulf %30, %260 : vector<2x256xf32>
      %c51 = arith.constant 51 : index
      %262 = memref.load %arg3[%c51] : memref<98xf32, #tpu.memory_space<smem>>
      %263 = vector.broadcast %262 : f32 to vector<2x256xf32>
      %264 = arith.mulf %32, %263 : vector<2x256xf32>
      %265 = arith.addf %261, %264 : vector<2x256xf32>
      %c9 = arith.constant 9 : index
      %266 = memref.load %arg3[%c9] : memref<98xf32, #tpu.memory_space<smem>>
      %267 = vector.broadcast %266 : f32 to vector<2x256xf32>
      %268 = arith.mulf %44, %267 : vector<2x256xf32>
      %269 = arith.addf %265, %268 : vector<2x256xf32>
      %c58 = arith.constant 58 : index
      %270 = memref.load %arg3[%c58] : memref<98xf32, #tpu.memory_space<smem>>
      %271 = vector.broadcast %270 : f32 to vector<2x256xf32>
      %272 = arith.mulf %46, %271 : vector<2x256xf32>
      %273 = arith.addf %269, %272 : vector<2x256xf32>
      %c16 = arith.constant 16 : index
      %274 = memref.load %arg3[%c16] : memref<98xf32, #tpu.memory_space<smem>>
      %275 = vector.broadcast %274 : f32 to vector<2x256xf32>
      %276 = arith.mulf %58, %275 : vector<2x256xf32>
      %277 = arith.addf %273, %276 : vector<2x256xf32>
      %c65 = arith.constant 65 : index
      %278 = memref.load %arg3[%c65] : memref<98xf32, #tpu.memory_space<smem>>
      %279 = vector.broadcast %278 : f32 to vector<2x256xf32>
      %280 = arith.mulf %60, %279 : vector<2x256xf32>
      %281 = arith.addf %277, %280 : vector<2x256xf32>
      %c23 = arith.constant 23 : index
      %282 = memref.load %arg3[%c23] : memref<98xf32, #tpu.memory_space<smem>>
      %283 = vector.broadcast %282 : f32 to vector<2x256xf32>
      %284 = arith.mulf %70, %283 : vector<2x256xf32>
      %285 = arith.addf %281, %284 : vector<2x256xf32>
      %c72 = arith.constant 72 : index
      %286 = memref.load %arg3[%c72] : memref<98xf32, #tpu.memory_space<smem>>
      %287 = vector.broadcast %286 : f32 to vector<2x256xf32>
      %288 = arith.mulf %72, %287 : vector<2x256xf32>
      %289 = arith.addf %285, %288 : vector<2x256xf32>
      %c30 = arith.constant 30 : index
      %290 = memref.load %arg3[%c30] : memref<98xf32, #tpu.memory_space<smem>>
      %291 = vector.broadcast %290 : f32 to vector<2x256xf32>
      %292 = arith.mulf %84, %291 : vector<2x256xf32>
      %293 = arith.addf %289, %292 : vector<2x256xf32>
      %c79 = arith.constant 79 : index
      %294 = memref.load %arg3[%c79] : memref<98xf32, #tpu.memory_space<smem>>
      %295 = vector.broadcast %294 : f32 to vector<2x256xf32>
      %296 = arith.mulf %86, %295 : vector<2x256xf32>
      %297 = arith.addf %293, %296 : vector<2x256xf32>
      %c37 = arith.constant 37 : index
      %298 = memref.load %arg3[%c37] : memref<98xf32, #tpu.memory_space<smem>>
      %299 = vector.broadcast %298 : f32 to vector<2x256xf32>
      %300 = arith.mulf %98, %299 : vector<2x256xf32>
      %301 = arith.addf %297, %300 : vector<2x256xf32>
      %c86 = arith.constant 86 : index
      %302 = memref.load %arg3[%c86] : memref<98xf32, #tpu.memory_space<smem>>
      %303 = vector.broadcast %302 : f32 to vector<2x256xf32>
      %304 = arith.mulf %100, %303 : vector<2x256xf32>
      %305 = arith.addf %301, %304 : vector<2x256xf32>
      %c44 = arith.constant 44 : index
      %306 = memref.load %arg3[%c44] : memref<98xf32, #tpu.memory_space<smem>>
      %307 = vector.broadcast %306 : f32 to vector<2x256xf32>
      %308 = arith.mulf %112, %307 : vector<2x256xf32>
      %309 = arith.addf %305, %308 : vector<2x256xf32>
      %c93 = arith.constant 93 : index
      %310 = memref.load %arg3[%c93] : memref<98xf32, #tpu.memory_space<smem>>
      %311 = vector.broadcast %310 : f32 to vector<2x256xf32>
      %312 = arith.mulf %114, %311 : vector<2x256xf32>
      %313 = arith.addf %309, %312 : vector<2x256xf32>
      %c1_i32_60 = arith.constant 1 : i32
      %314 = tpu.dynamic_rotate %313 by %c1_i32_60 dim 1 : vector<2x256xf32>, i32 -> vector<2x256xf32>
      %315 = vector.broadcast %258 : vector<1x256xf32> to vector<2x256xf32>
      %316 = arith.mulf %314, %315 : vector<2x256xf32>
      %317 = arith.addf %183, %316 : vector<2x256xf32>
      %c0_i32_61 = arith.constant 0 : i32
      %318 = vector.broadcast %c0_i32_61 : i32 to vector<1x256xi32>
      %319 = arith.cmpi sge, %18, %318 : vector<1x256xi32>
      %c16_i32_62 = arith.constant 16 : i32
      %320 = vector.broadcast %c16_i32_62 : i32 to vector<1x256xi32>
      %321 = arith.cmpi slt, %18, %320 : vector<1x256xi32>
      %322 = arith.andi %319, %321 : vector<1x256xi1>
      %cst_63 = arith.constant 1.000000e+00 : f32
      %cst_64 = arith.constant 0.000000e+00 : f32
      %323 = vector.broadcast %cst_63 : f32 to vector<1x256xf32>
      %324 = vector.broadcast %cst_64 : f32 to vector<1x256xf32>
      %325 = arith.select %322, %323, %324 : vector<1x256xi1>, vector<1x256xf32>
      %c3 = arith.constant 3 : index
      %326 = memref.load %arg3[%c3] : memref<98xf32, #tpu.memory_space<smem>>
      %327 = vector.broadcast %326 : f32 to vector<2x256xf32>
      %328 = arith.mulf %30, %327 : vector<2x256xf32>
      %c52 = arith.constant 52 : index
      %329 = memref.load %arg3[%c52] : memref<98xf32, #tpu.memory_space<smem>>
      %330 = vector.broadcast %329 : f32 to vector<2x256xf32>
      %331 = arith.mulf %32, %330 : vector<2x256xf32>
      %332 = arith.addf %328, %331 : vector<2x256xf32>
      %c10 = arith.constant 10 : index
      %333 = memref.load %arg3[%c10] : memref<98xf32, #tpu.memory_space<smem>>
      %334 = vector.broadcast %333 : f32 to vector<2x256xf32>
      %335 = arith.mulf %44, %334 : vector<2x256xf32>
      %336 = arith.addf %332, %335 : vector<2x256xf32>
      %c59 = arith.constant 59 : index
      %337 = memref.load %arg3[%c59] : memref<98xf32, #tpu.memory_space<smem>>
      %338 = vector.broadcast %337 : f32 to vector<2x256xf32>
      %339 = arith.mulf %46, %338 : vector<2x256xf32>
      %340 = arith.addf %336, %339 : vector<2x256xf32>
      %c17 = arith.constant 17 : index
      %341 = memref.load %arg3[%c17] : memref<98xf32, #tpu.memory_space<smem>>
      %342 = vector.broadcast %341 : f32 to vector<2x256xf32>
      %343 = arith.mulf %58, %342 : vector<2x256xf32>
      %344 = arith.addf %340, %343 : vector<2x256xf32>
      %c66 = arith.constant 66 : index
      %345 = memref.load %arg3[%c66] : memref<98xf32, #tpu.memory_space<smem>>
      %346 = vector.broadcast %345 : f32 to vector<2x256xf32>
      %347 = arith.mulf %60, %346 : vector<2x256xf32>
      %348 = arith.addf %344, %347 : vector<2x256xf32>
      %c24 = arith.constant 24 : index
      %349 = memref.load %arg3[%c24] : memref<98xf32, #tpu.memory_space<smem>>
      %350 = vector.broadcast %349 : f32 to vector<2x256xf32>
      %351 = arith.mulf %70, %350 : vector<2x256xf32>
      %352 = arith.addf %348, %351 : vector<2x256xf32>
      %c73 = arith.constant 73 : index
      %353 = memref.load %arg3[%c73] : memref<98xf32, #tpu.memory_space<smem>>
      %354 = vector.broadcast %353 : f32 to vector<2x256xf32>
      %355 = arith.mulf %72, %354 : vector<2x256xf32>
      %356 = arith.addf %352, %355 : vector<2x256xf32>
      %c31 = arith.constant 31 : index
      %357 = memref.load %arg3[%c31] : memref<98xf32, #tpu.memory_space<smem>>
      %358 = vector.broadcast %357 : f32 to vector<2x256xf32>
      %359 = arith.mulf %84, %358 : vector<2x256xf32>
      %360 = arith.addf %356, %359 : vector<2x256xf32>
      %c80 = arith.constant 80 : index
      %361 = memref.load %arg3[%c80] : memref<98xf32, #tpu.memory_space<smem>>
      %362 = vector.broadcast %361 : f32 to vector<2x256xf32>
      %363 = arith.mulf %86, %362 : vector<2x256xf32>
      %364 = arith.addf %360, %363 : vector<2x256xf32>
      %c38 = arith.constant 38 : index
      %365 = memref.load %arg3[%c38] : memref<98xf32, #tpu.memory_space<smem>>
      %366 = vector.broadcast %365 : f32 to vector<2x256xf32>
      %367 = arith.mulf %98, %366 : vector<2x256xf32>
      %368 = arith.addf %364, %367 : vector<2x256xf32>
      %c87 = arith.constant 87 : index
      %369 = memref.load %arg3[%c87] : memref<98xf32, #tpu.memory_space<smem>>
      %370 = vector.broadcast %369 : f32 to vector<2x256xf32>
      %371 = arith.mulf %100, %370 : vector<2x256xf32>
      %372 = arith.addf %368, %371 : vector<2x256xf32>
      %c45 = arith.constant 45 : index
      %373 = memref.load %arg3[%c45] : memref<98xf32, #tpu.memory_space<smem>>
      %374 = vector.broadcast %373 : f32 to vector<2x256xf32>
      %375 = arith.mulf %112, %374 : vector<2x256xf32>
      %376 = arith.addf %372, %375 : vector<2x256xf32>
      %c94 = arith.constant 94 : index
      %377 = memref.load %arg3[%c94] : memref<98xf32, #tpu.memory_space<smem>>
      %378 = vector.broadcast %377 : f32 to vector<2x256xf32>
      %379 = arith.mulf %114, %378 : vector<2x256xf32>
      %380 = arith.addf %376, %379 : vector<2x256xf32>
      %381 = vector.broadcast %325 : vector<1x256xf32> to vector<2x256xf32>
      %382 = arith.mulf %380, %381 : vector<2x256xf32>
      %383 = arith.addf %250, %382 : vector<2x256xf32>
      %c0_i32_65 = arith.constant 0 : i32
      %384 = vector.broadcast %c0_i32_65 : i32 to vector<1x256xi32>
      %385 = arith.cmpi sge, %18, %384 : vector<1x256xi32>
      %c15_i32_66 = arith.constant 15 : i32
      %386 = vector.broadcast %c15_i32_66 : i32 to vector<1x256xi32>
      %387 = arith.cmpi slt, %18, %386 : vector<1x256xi32>
      %388 = arith.andi %385, %387 : vector<1x256xi1>
      %cst_67 = arith.constant 1.000000e+00 : f32
      %cst_68 = arith.constant 0.000000e+00 : f32
      %389 = vector.broadcast %cst_67 : f32 to vector<1x256xf32>
      %390 = vector.broadcast %cst_68 : f32 to vector<1x256xf32>
      %391 = arith.select %388, %389, %390 : vector<1x256xi1>, vector<1x256xf32>
      %c4 = arith.constant 4 : index
      %392 = memref.load %arg3[%c4] : memref<98xf32, #tpu.memory_space<smem>>
      %393 = vector.broadcast %392 : f32 to vector<2x256xf32>
      %394 = arith.mulf %30, %393 : vector<2x256xf32>
      %c53 = arith.constant 53 : index
      %395 = memref.load %arg3[%c53] : memref<98xf32, #tpu.memory_space<smem>>
      %396 = vector.broadcast %395 : f32 to vector<2x256xf32>
      %397 = arith.mulf %32, %396 : vector<2x256xf32>
      %398 = arith.addf %394, %397 : vector<2x256xf32>
      %c11 = arith.constant 11 : index
      %399 = memref.load %arg3[%c11] : memref<98xf32, #tpu.memory_space<smem>>
      %400 = vector.broadcast %399 : f32 to vector<2x256xf32>
      %401 = arith.mulf %44, %400 : vector<2x256xf32>
      %402 = arith.addf %398, %401 : vector<2x256xf32>
      %c60 = arith.constant 60 : index
      %403 = memref.load %arg3[%c60] : memref<98xf32, #tpu.memory_space<smem>>
      %404 = vector.broadcast %403 : f32 to vector<2x256xf32>
      %405 = arith.mulf %46, %404 : vector<2x256xf32>
      %406 = arith.addf %402, %405 : vector<2x256xf32>
      %c18 = arith.constant 18 : index
      %407 = memref.load %arg3[%c18] : memref<98xf32, #tpu.memory_space<smem>>
      %408 = vector.broadcast %407 : f32 to vector<2x256xf32>
      %409 = arith.mulf %58, %408 : vector<2x256xf32>
      %410 = arith.addf %406, %409 : vector<2x256xf32>
      %c67 = arith.constant 67 : index
      %411 = memref.load %arg3[%c67] : memref<98xf32, #tpu.memory_space<smem>>
      %412 = vector.broadcast %411 : f32 to vector<2x256xf32>
      %413 = arith.mulf %60, %412 : vector<2x256xf32>
      %414 = arith.addf %410, %413 : vector<2x256xf32>
      %c25 = arith.constant 25 : index
      %415 = memref.load %arg3[%c25] : memref<98xf32, #tpu.memory_space<smem>>
      %416 = vector.broadcast %415 : f32 to vector<2x256xf32>
      %417 = arith.mulf %70, %416 : vector<2x256xf32>
      %418 = arith.addf %414, %417 : vector<2x256xf32>
      %c74 = arith.constant 74 : index
      %419 = memref.load %arg3[%c74] : memref<98xf32, #tpu.memory_space<smem>>
      %420 = vector.broadcast %419 : f32 to vector<2x256xf32>
      %421 = arith.mulf %72, %420 : vector<2x256xf32>
      %422 = arith.addf %418, %421 : vector<2x256xf32>
      %c32 = arith.constant 32 : index
      %423 = memref.load %arg3[%c32] : memref<98xf32, #tpu.memory_space<smem>>
      %424 = vector.broadcast %423 : f32 to vector<2x256xf32>
      %425 = arith.mulf %84, %424 : vector<2x256xf32>
      %426 = arith.addf %422, %425 : vector<2x256xf32>
      %c81 = arith.constant 81 : index
      %427 = memref.load %arg3[%c81] : memref<98xf32, #tpu.memory_space<smem>>
      %428 = vector.broadcast %427 : f32 to vector<2x256xf32>
      %429 = arith.mulf %86, %428 : vector<2x256xf32>
      %430 = arith.addf %426, %429 : vector<2x256xf32>
      %c39 = arith.constant 39 : index
      %431 = memref.load %arg3[%c39] : memref<98xf32, #tpu.memory_space<smem>>
      %432 = vector.broadcast %431 : f32 to vector<2x256xf32>
      %433 = arith.mulf %98, %432 : vector<2x256xf32>
      %434 = arith.addf %430, %433 : vector<2x256xf32>
      %c88 = arith.constant 88 : index
      %435 = memref.load %arg3[%c88] : memref<98xf32, #tpu.memory_space<smem>>
      %436 = vector.broadcast %435 : f32 to vector<2x256xf32>
      %437 = arith.mulf %100, %436 : vector<2x256xf32>
      %438 = arith.addf %434, %437 : vector<2x256xf32>
      %c46 = arith.constant 46 : index
      %439 = memref.load %arg3[%c46] : memref<98xf32, #tpu.memory_space<smem>>
      %440 = vector.broadcast %439 : f32 to vector<2x256xf32>
      %441 = arith.mulf %112, %440 : vector<2x256xf32>
      %442 = arith.addf %438, %441 : vector<2x256xf32>
      %c95 = arith.constant 95 : index
      %443 = memref.load %arg3[%c95] : memref<98xf32, #tpu.memory_space<smem>>
      %444 = vector.broadcast %443 : f32 to vector<2x256xf32>
      %445 = arith.mulf %114, %444 : vector<2x256xf32>
      %446 = arith.addf %442, %445 : vector<2x256xf32>
      %c255_i32 = arith.constant 255 : i32
      %447 = tpu.dynamic_rotate %446 by %c255_i32 dim 1 : vector<2x256xf32>, i32 -> vector<2x256xf32>
      %448 = vector.broadcast %391 : vector<1x256xf32> to vector<2x256xf32>
      %449 = arith.mulf %447, %448 : vector<2x256xf32>
      %450 = arith.addf %317, %449 : vector<2x256xf32>
      %c0_i32_69 = arith.constant 0 : i32
      %451 = vector.broadcast %c0_i32_69 : i32 to vector<1x256xi32>
      %452 = arith.cmpi sge, %18, %451 : vector<1x256xi32>
      %c14_i32 = arith.constant 14 : i32
      %453 = vector.broadcast %c14_i32 : i32 to vector<1x256xi32>
      %454 = arith.cmpi slt, %18, %453 : vector<1x256xi32>
      %455 = arith.andi %452, %454 : vector<1x256xi1>
      %cst_70 = arith.constant 1.000000e+00 : f32
      %cst_71 = arith.constant 0.000000e+00 : f32
      %456 = vector.broadcast %cst_70 : f32 to vector<1x256xf32>
      %457 = vector.broadcast %cst_71 : f32 to vector<1x256xf32>
      %458 = arith.select %455, %456, %457 : vector<1x256xi1>, vector<1x256xf32>
      %c5 = arith.constant 5 : index
      %459 = memref.load %arg3[%c5] : memref<98xf32, #tpu.memory_space<smem>>
      %460 = vector.broadcast %459 : f32 to vector<2x256xf32>
      %461 = arith.mulf %30, %460 : vector<2x256xf32>
      %c54 = arith.constant 54 : index
      %462 = memref.load %arg3[%c54] : memref<98xf32, #tpu.memory_space<smem>>
      %463 = vector.broadcast %462 : f32 to vector<2x256xf32>
      %464 = arith.mulf %32, %463 : vector<2x256xf32>
      %465 = arith.addf %461, %464 : vector<2x256xf32>
      %c12 = arith.constant 12 : index
      %466 = memref.load %arg3[%c12] : memref<98xf32, #tpu.memory_space<smem>>
      %467 = vector.broadcast %466 : f32 to vector<2x256xf32>
      %468 = arith.mulf %44, %467 : vector<2x256xf32>
      %469 = arith.addf %465, %468 : vector<2x256xf32>
      %c61 = arith.constant 61 : index
      %470 = memref.load %arg3[%c61] : memref<98xf32, #tpu.memory_space<smem>>
      %471 = vector.broadcast %470 : f32 to vector<2x256xf32>
      %472 = arith.mulf %46, %471 : vector<2x256xf32>
      %473 = arith.addf %469, %472 : vector<2x256xf32>
      %c19 = arith.constant 19 : index
      %474 = memref.load %arg3[%c19] : memref<98xf32, #tpu.memory_space<smem>>
      %475 = vector.broadcast %474 : f32 to vector<2x256xf32>
      %476 = arith.mulf %58, %475 : vector<2x256xf32>
      %477 = arith.addf %473, %476 : vector<2x256xf32>
      %c68 = arith.constant 68 : index
      %478 = memref.load %arg3[%c68] : memref<98xf32, #tpu.memory_space<smem>>
      %479 = vector.broadcast %478 : f32 to vector<2x256xf32>
      %480 = arith.mulf %60, %479 : vector<2x256xf32>
      %481 = arith.addf %477, %480 : vector<2x256xf32>
      %c26 = arith.constant 26 : index
      %482 = memref.load %arg3[%c26] : memref<98xf32, #tpu.memory_space<smem>>
      %483 = vector.broadcast %482 : f32 to vector<2x256xf32>
      %484 = arith.mulf %70, %483 : vector<2x256xf32>
      %485 = arith.addf %481, %484 : vector<2x256xf32>
      %c75 = arith.constant 75 : index
      %486 = memref.load %arg3[%c75] : memref<98xf32, #tpu.memory_space<smem>>
      %487 = vector.broadcast %486 : f32 to vector<2x256xf32>
      %488 = arith.mulf %72, %487 : vector<2x256xf32>
      %489 = arith.addf %485, %488 : vector<2x256xf32>
      %c33 = arith.constant 33 : index
      %490 = memref.load %arg3[%c33] : memref<98xf32, #tpu.memory_space<smem>>
      %491 = vector.broadcast %490 : f32 to vector<2x256xf32>
      %492 = arith.mulf %84, %491 : vector<2x256xf32>
      %493 = arith.addf %489, %492 : vector<2x256xf32>
      %c82 = arith.constant 82 : index
      %494 = memref.load %arg3[%c82] : memref<98xf32, #tpu.memory_space<smem>>
      %495 = vector.broadcast %494 : f32 to vector<2x256xf32>
      %496 = arith.mulf %86, %495 : vector<2x256xf32>
      %497 = arith.addf %493, %496 : vector<2x256xf32>
      %c40 = arith.constant 40 : index
      %498 = memref.load %arg3[%c40] : memref<98xf32, #tpu.memory_space<smem>>
      %499 = vector.broadcast %498 : f32 to vector<2x256xf32>
      %500 = arith.mulf %98, %499 : vector<2x256xf32>
      %501 = arith.addf %497, %500 : vector<2x256xf32>
      %c89 = arith.constant 89 : index
      %502 = memref.load %arg3[%c89] : memref<98xf32, #tpu.memory_space<smem>>
      %503 = vector.broadcast %502 : f32 to vector<2x256xf32>
      %504 = arith.mulf %100, %503 : vector<2x256xf32>
      %505 = arith.addf %501, %504 : vector<2x256xf32>
      %c47 = arith.constant 47 : index
      %506 = memref.load %arg3[%c47] : memref<98xf32, #tpu.memory_space<smem>>
      %507 = vector.broadcast %506 : f32 to vector<2x256xf32>
      %508 = arith.mulf %112, %507 : vector<2x256xf32>
      %509 = arith.addf %505, %508 : vector<2x256xf32>
      %c96 = arith.constant 96 : index
      %510 = memref.load %arg3[%c96] : memref<98xf32, #tpu.memory_space<smem>>
      %511 = vector.broadcast %510 : f32 to vector<2x256xf32>
      %512 = arith.mulf %114, %511 : vector<2x256xf32>
      %513 = arith.addf %509, %512 : vector<2x256xf32>
      %c254_i32 = arith.constant 254 : i32
      %514 = tpu.dynamic_rotate %513 by %c254_i32 dim 1 : vector<2x256xf32>, i32 -> vector<2x256xf32>
      %515 = vector.broadcast %458 : vector<1x256xf32> to vector<2x256xf32>
      %516 = arith.mulf %514, %515 : vector<2x256xf32>
      %517 = arith.addf %383, %516 : vector<2x256xf32>
      %c0_i32_72 = arith.constant 0 : i32
      %518 = vector.broadcast %c0_i32_72 : i32 to vector<1x256xi32>
      %519 = arith.cmpi sge, %18, %518 : vector<1x256xi32>
      %c13_i32 = arith.constant 13 : i32
      %520 = vector.broadcast %c13_i32 : i32 to vector<1x256xi32>
      %521 = arith.cmpi slt, %18, %520 : vector<1x256xi32>
      %522 = arith.andi %519, %521 : vector<1x256xi1>
      %cst_73 = arith.constant 1.000000e+00 : f32
      %cst_74 = arith.constant 0.000000e+00 : f32
      %523 = vector.broadcast %cst_73 : f32 to vector<1x256xf32>
      %524 = vector.broadcast %cst_74 : f32 to vector<1x256xf32>
      %525 = arith.select %522, %523, %524 : vector<1x256xi1>, vector<1x256xf32>
      %c6 = arith.constant 6 : index
      %526 = memref.load %arg3[%c6] : memref<98xf32, #tpu.memory_space<smem>>
      %527 = vector.broadcast %526 : f32 to vector<2x256xf32>
      %528 = arith.mulf %30, %527 : vector<2x256xf32>
      %c55 = arith.constant 55 : index
      %529 = memref.load %arg3[%c55] : memref<98xf32, #tpu.memory_space<smem>>
      %530 = vector.broadcast %529 : f32 to vector<2x256xf32>
      %531 = arith.mulf %32, %530 : vector<2x256xf32>
      %532 = arith.addf %528, %531 : vector<2x256xf32>
      %c13 = arith.constant 13 : index
      %533 = memref.load %arg3[%c13] : memref<98xf32, #tpu.memory_space<smem>>
      %534 = vector.broadcast %533 : f32 to vector<2x256xf32>
      %535 = arith.mulf %44, %534 : vector<2x256xf32>
      %536 = arith.addf %532, %535 : vector<2x256xf32>
      %c62 = arith.constant 62 : index
      %537 = memref.load %arg3[%c62] : memref<98xf32, #tpu.memory_space<smem>>
      %538 = vector.broadcast %537 : f32 to vector<2x256xf32>
      %539 = arith.mulf %46, %538 : vector<2x256xf32>
      %540 = arith.addf %536, %539 : vector<2x256xf32>
      %c20 = arith.constant 20 : index
      %541 = memref.load %arg3[%c20] : memref<98xf32, #tpu.memory_space<smem>>
      %542 = vector.broadcast %541 : f32 to vector<2x256xf32>
      %543 = arith.mulf %58, %542 : vector<2x256xf32>
      %544 = arith.addf %540, %543 : vector<2x256xf32>
      %c69 = arith.constant 69 : index
      %545 = memref.load %arg3[%c69] : memref<98xf32, #tpu.memory_space<smem>>
      %546 = vector.broadcast %545 : f32 to vector<2x256xf32>
      %547 = arith.mulf %60, %546 : vector<2x256xf32>
      %548 = arith.addf %544, %547 : vector<2x256xf32>
      %c27 = arith.constant 27 : index
      %549 = memref.load %arg3[%c27] : memref<98xf32, #tpu.memory_space<smem>>
      %550 = vector.broadcast %549 : f32 to vector<2x256xf32>
      %551 = arith.mulf %70, %550 : vector<2x256xf32>
      %552 = arith.addf %548, %551 : vector<2x256xf32>
      %c76 = arith.constant 76 : index
      %553 = memref.load %arg3[%c76] : memref<98xf32, #tpu.memory_space<smem>>
      %554 = vector.broadcast %553 : f32 to vector<2x256xf32>
      %555 = arith.mulf %72, %554 : vector<2x256xf32>
      %556 = arith.addf %552, %555 : vector<2x256xf32>
      %c34 = arith.constant 34 : index
      %557 = memref.load %arg3[%c34] : memref<98xf32, #tpu.memory_space<smem>>
      %558 = vector.broadcast %557 : f32 to vector<2x256xf32>
      %559 = arith.mulf %84, %558 : vector<2x256xf32>
      %560 = arith.addf %556, %559 : vector<2x256xf32>
      %c83 = arith.constant 83 : index
      %561 = memref.load %arg3[%c83] : memref<98xf32, #tpu.memory_space<smem>>
      %562 = vector.broadcast %561 : f32 to vector<2x256xf32>
      %563 = arith.mulf %86, %562 : vector<2x256xf32>
      %564 = arith.addf %560, %563 : vector<2x256xf32>
      %c41 = arith.constant 41 : index
      %565 = memref.load %arg3[%c41] : memref<98xf32, #tpu.memory_space<smem>>
      %566 = vector.broadcast %565 : f32 to vector<2x256xf32>
      %567 = arith.mulf %98, %566 : vector<2x256xf32>
      %568 = arith.addf %564, %567 : vector<2x256xf32>
      %c90 = arith.constant 90 : index
      %569 = memref.load %arg3[%c90] : memref<98xf32, #tpu.memory_space<smem>>
      %570 = vector.broadcast %569 : f32 to vector<2x256xf32>
      %571 = arith.mulf %100, %570 : vector<2x256xf32>
      %572 = arith.addf %568, %571 : vector<2x256xf32>
      %c48 = arith.constant 48 : index
      %573 = memref.load %arg3[%c48] : memref<98xf32, #tpu.memory_space<smem>>
      %574 = vector.broadcast %573 : f32 to vector<2x256xf32>
      %575 = arith.mulf %112, %574 : vector<2x256xf32>
      %576 = arith.addf %572, %575 : vector<2x256xf32>
      %c97 = arith.constant 97 : index
      %577 = memref.load %arg3[%c97] : memref<98xf32, #tpu.memory_space<smem>>
      %578 = vector.broadcast %577 : f32 to vector<2x256xf32>
      %579 = arith.mulf %114, %578 : vector<2x256xf32>
      %580 = arith.addf %576, %579 : vector<2x256xf32>
      %c253_i32 = arith.constant 253 : i32
      %581 = tpu.dynamic_rotate %580 by %c253_i32 dim 1 : vector<2x256xf32>, i32 -> vector<2x256xf32>
      %582 = vector.broadcast %525 : vector<1x256xf32> to vector<2x256xf32>
      %583 = arith.mulf %581, %582 : vector<2x256xf32>
      %584 = arith.addf %450, %583 : vector<2x256xf32>
      %585 = arith.addf %584, %517 : vector<2x256xf32>
      %586 = arith.negf %585 : vector<2x256xf32>
      %587 = math.exp %586 : vector<2x256xf32>
      %cst_75 = arith.constant 1.000000e+00 : f32
      %588 = vector.broadcast %cst_75 : f32 to vector<2x256xf32>
      %589 = arith.addf %588, %587 : vector<2x256xf32>
      %590 = arith.divf %588, %589 : vector<2x256xf32>
      %c0_76 = arith.constant 0 : index
      %c0_77 = arith.constant 0 : index
      %591 = vector.load %arg4[%c0_76, %c0_77] : memref<2x256xf32, #tpu.memory_space<vmem>>, vector<2x256xf32>
      tpu.vector_store %arg4[%c0_76, %c0_77], %590 {strides = array<i32>} : memref<2x256xf32, #tpu.memory_space<vmem>>, vector<2x256xf32>,
    } else {
    }
    return
  }
  func.func @transform_0(%arg0: i32, %arg1: i32) -> (i32, i32, i32) {
    %c0_i32 = arith.constant 0 : i32
    %c0_i32_0 = arith.constant 0 : i32
    return %arg0, %arg1, %c0_i32 : i32, i32, i32
  }
  func.func @transform_1(%arg0: i32, %arg1: i32) -> i32 {
    %c0_i32 = arith.constant 0 : i32
    %c0_i32_0 = arith.constant 0 : i32
    return %c0_i32 : i32
  }
  func.func @transform_2(%arg0: i32, %arg1: i32) -> (i32, i32) {
    %c0_i32 = arith.constant 0 : i32
    %c0_i32_0 = arith.constant 0 : i32
    return %arg0, %c0_i32 : i32, i32
  }
}

</mosaic_0001>

<llo_original>
// kernel: tpu_custom_call.1
$region0: #{tpu_custom_call.1}
  #allocation0 [shape = 'u32[]', space=smem, size = 0x4, offset = 0x4, fixed_abs, tag = 'smem constant byte address 0x4 - core index']
  #allocation1 [shape = 'u32[144,128]{1,0:T(1,128)}', space=vmem, size = 0x12000, scoped, tag = 'internal scratch']
  #allocation2 [shape = 'f32[2,256]{1,0:T(2,128)}', space=vmem, size = 0x800, scoped, tag = 'scratch operand']
  #allocation3 [shape = 'f32[2,256]{1,0:T(2,128)}', space=vmem, size = 0x800, scoped, tag = 'scratch operand']
  %s0 = inlined_call_operand.hbm [shape: f32[2,4,256], index: 0, kind: input, shape index: {}]
  %s1 = inlined_call_operand.vmem [shape: f32[98], index: 1, kind: input, shape index: {}]
  %s2 = inlined_call_operand.hbm [shape: f32[2,256], index: 2, kind: output, shape index: {}]
  %s3 = sld [smem:[#allocation0]]
  $region38: #{tpu_custom_call.1} parent=0
    _
  %s5 = ssub.s32 1, %s3
  %s6 = scalar_select 0, %s5, %s3
  $region1: #{tpu_custom_call.1} parent=0
    #allocation4 [shape = 'u8[8192]{0}', space=vmem, size = 0x2000, scoped, tag = 'input window, operand 0, single buffered']
    #allocation5 [shape = 's32[1]{0}', space=sflag, size = 0x4, scoped, tag = 'scoped memory for tpu_custom_call.1']
    #allocation6 [shape = 's32[1]{0}', space=sflag, size = 0x4, scoped, tag = 'scoped memory for tpu_custom_call.1']
    #allocation7 [shape = 's32[1]{0}', space=sflag, size = 0x4, scoped, tag = 'scoped memory for tpu_custom_call.1']
    #allocation8 [shape = 'u8[512]{0}', space=smem, size = 0x200, scoped, tag = 'input window, operand 1, single buffered']
    #allocation9 [shape = 'u8[2048]{0}', space=vmem, size = 0x800, scoped, tag = 'output window, operand 0, single buffered']
    %7 = vsyncpa [#allocation5], 0
    %8 = vsyncpa [#allocation7], 0
    %9 = vsyncpa [#allocation6], 0
    // Predicated region
    $region2: #{tpu_custom_call.1} parent=1 // pred_check
      _
    $region3: #{tpu_custom_call.1} parent=1 // pred_check_branch
      %11 = sbr.rel (0) target = $region5
    $region4: #{tpu_custom_call.1} parent=1 // pred_region
      %s13 = ssub.s32 256, 256
      %14 = vsyncadd [#allocation5], %s13
      %s15 = sshll.u32 [#allocation4], 4
      %s16 = int_to_ptr.vmem [resolvable:$true] %s15
      %21 = dma.hbm_to_vmem [thread:$0]  %s0, 256, %s16, [#allocation5], 128, 128, 8
    $region5: #{tpu_custom_call.1} parent=1 // pred_fallthru
      _
    // Predicated region
    $region6: #{tpu_custom_call.1} parent=1 // pred_check
      _
    $region7: #{tpu_custom_call.1} parent=1 // pred_check_branch
      %23 = sbr.rel (0) target = $region9
    $region8: #{tpu_custom_call.1} parent=1 // pred_region
      %s25 = ssub.s32 16, 16
      %26 = vsyncadd [#allocation7], %s25
      %s28 = sshll.u32 %s1, 4
      %s29 = int_to_ptr.vmem [resolvable:$true] %s28
      %31 = dma.vmem_to_smem %s29, 16, [#allocation8], [#allocation7]
    $region9: #{tpu_custom_call.1} parent=1 // pred_fallthru
      _
    // Predicated region
    $region10: #{tpu_custom_call.1} parent=1 // pred_check
      _
    $region11: #{tpu_custom_call.1} parent=1 // pred_check_branch
      %33 = sbr.rel (0) target = $region13
    $region12: #{tpu_custom_call.1} parent=1 // pred_region
      %34 = dma.done [#allocation5], 256
    $region13: #{tpu_custom_call.1} parent=1 // pred_fallthru
      _
    // Predicated region
    $region14: #{tpu_custom_call.1} parent=1 // pred_check
      _
    $region15: #{tpu_custom_call.1} parent=1 // pred_check_branch
      %36 = sbr.rel (0) target = $region17
    $region16: #{tpu_custom_call.1} parent=1 // pred_region
      %37 = dma.done [#allocation7], 16
    $region17: #{tpu_custom_call.1} parent=1 // pred_fallthru
      _
    %38 = sfence
    %v39 = vld [vmem:[#allocation4] sm:$0xff]
    %v40 = vld [vmem:[#allocation4 + $0x8] sm:$0xff]
    %v43 = vcombine.high %v39, %v39
    %v44 = vcombine.high %v40, %v40
    %vm47 = vcmask 1043456
    %v48 = vsel %vm47, %v39, 0.0
    %v49 = vrot.slane %v48, 4
    %v50 = vadd.f32 %v48, %v49
    %v51 = vrot.slane %v50, 2
    %v52 = vadd.f32 %v50, %v51
    %v53 = vrot.slane %v52, 1
    %v54 = vadd.f32 %v52, %v53
    %v55 = vsel %vm47, %v43, 0.0
    %v56 = vrot.slane %v55, 4
    %v57 = vadd.f32 %v55, %v56
    %v58 = vrot.slane %v57, 2
    %v59 = vadd.f32 %v57, %v58
    %v60 = vrot.slane %v59, 1
    %v61 = vadd.f32 %v59, %v60
    %v62 = vsel %vm47, %v40, 0.0
    %v63 = vrot.slane %v62, 4
    %v64 = vadd.f32 %v62, %v63
    %v65 = vrot.slane %v64, 2
    %v66 = vadd.f32 %v64, %v65
    %v67 = vrot.slane %v66, 1
    %v68 = vadd.f32 %v66, %v67
    %v69 = vsel %vm47, %v44, 0.0
    %v70 = vrot.slane %v69, 4
    %v71 = vadd.f32 %v69, %v70
    %v72 = vrot.slane %v71, 2
    %v73 = vadd.f32 %v71, %v72
    %v74 = vrot.slane %v73, 1
    %v75 = vadd.f32 %v73, %v74
    %v76 = vsel %vm47, %v39, -inf
    %v77 = vrot.slane %v76, 4
    %v78 = vmax.f32 %v76, %v77
    %v79 = vrot.slane %v78, 2
    %v80 = vmax.f32 %v78, %v79
    %v81 = vrot.slane %v80, 1
    %v82 = vmax.f32 %v80, %v81
    %v83 = vsel %vm47, %v43, -inf
    %v84 = vrot.slane %v83, 4
    %v85 = vmax.f32 %v83, %v84
    %v86 = vrot.slane %v85, 2
    %v87 = vmax.f32 %v85, %v86
    %v88 = vrot.slane %v87, 1
    %v89 = vmax.f32 %v87, %v88
    %v90 = vsel %vm47, %v40, -inf
    %v91 = vrot.slane %v90, 4
    %v92 = vmax.f32 %v90, %v91
    %v93 = vrot.slane %v92, 2
    %v94 = vmax.f32 %v92, %v93
    %v95 = vrot.slane %v94, 1
    %v96 = vmax.f32 %v94, %v95
    %v97 = vsel %vm47, %v44, -inf
    %v98 = vrot.slane %v97, 4
    %v99 = vmax.f32 %v97, %v98
    %v100 = vrot.slane %v99, 2
    %v101 = vmax.f32 %v99, %v100
    %v102 = vrot.slane %v101, 1
    %v103 = vmax.f32 %v101, %v102
    %p104 = scmp.eq.s32.totalorder 0, 0
    // Predicated region
    $region18: #{tpu_custom_call.1} parent=1 // pred_check
      %p105 = pneg %p104
    $region19: #{tpu_custom_call.1} parent=1 // pred_check_branch
      %107 = sbr.rel (%p105) target = $region21
    $region20: #{tpu_custom_call.1} parent=1 // pred_region
      %v112 = vcombine.low %v54, %v61
      %v114 = vunpack.c.l.s4 1983009808
      %v115 = vunpack.c.0.s8 %v114
      %v116 = vlaneseq
      %v117 = vshrl.u32 %v116, 7
      %v118 = vsub.s32 %v115, %v117
      %v119 = vrot.slane %v112, %v118
      %v120 = vcombine.low %v68, %v75
      %v122 = vunpack.c.l.s4 1983009808
      %v123 = vunpack.c.0.s8 %v122
      %v124 = vlaneseq
      %v125 = vshrl.u32 %v124, 7
      %v126 = vsub.s32 %v123, %v125
      %v127 = vrot.slane %v120, %v126
      %vm128 = vcmask 1044484
      %v129 = vsel %vm128, %v119, %v119
      %vm130 = vcmask 1046534
      %v131 = vsel %vm130, %v119, %v129
      %v132 = vrot.slane %v127, 7
      %vm133 = vcmask 1041409
      %v134 = vsel %vm133, %v132, %v131
      %vm135 = vcmask 1043459
      %v136 = vsel %vm135, %v132, %v134
      %vm137 = vcmask 1045509
      %v138 = vsel %vm137, %v132, %v136
      %vm139 = vcmask 1047559
      %v140 = vsel %vm139, %v132, %v138
      %142 = vst [vmem:[#allocation2] sm:$0xf] %v140
      %v147 = vcombine.low %v82, %v89
      %v149 = vunpack.c.l.s4 1983009808
      %v150 = vunpack.c.0.s8 %v149
      %v151 = vlaneseq
      %v152 = vshrl.u32 %v151, 7
      %v153 = vsub.s32 %v150, %v152
      %v154 = vrot.slane %v147, %v153
      %v155 = vcombine.low %v96, %v103
      %v157 = vunpack.c.l.s4 1983009808
      %v158 = vunpack.c.0.s8 %v157
      %v159 = vlaneseq
      %v160 = vshrl.u32 %v159, 7
      %v161 = vsub.s32 %v158, %v160
      %v162 = vrot.slane %v155, %v161
      %v163 = vsel %vm128, %v154, %v154
      %v164 = vsel %vm130, %v154, %v163
      %v165 = vrot.slane %v162, 7
      %v166 = vsel %vm133, %v165, %v164
      %v167 = vsel %vm135, %v165, %v166
      %v168 = vsel %vm137, %v165, %v167
      %v169 = vsel %vm139, %v165, %v168
      %171 = vst [vmem:[#allocation3] sm:$0xf] %v169
    $region21: #{tpu_custom_call.1} parent=1 // pred_fallthru
      _
    %p172 = scmp.gt.s32.totalorder 0, 0
    // Predicated region
    $region22: #{tpu_custom_call.1} parent=1 // pred_check
      %p173 = pneg %p172
    $region23: #{tpu_custom_call.1} parent=1 // pred_check_branch
      %175 = sbr.rel (%p173) target = $region25
    $region24: #{tpu_custom_call.1} parent=1 // pred_region
      %v176 = vld [vmem:[#allocation2] sm:$0xf]
      %v181 = vcombine.low %v54, %v61
      %v183 = vunpack.c.l.s4 1983009808
      %v184 = vunpack.c.0.s8 %v183
      %v185 = vlaneseq
      %v186 = vshrl.u32 %v185, 7
      %v187 = vsub.s32 %v184, %v186
      %v188 = vrot.slane %v181, %v187
      %v189 = vcombine.low %v68, %v75
      %v191 = vunpack.c.l.s4 1983009808
      %v192 = vunpack.c.0.s8 %v191
      %v193 = vlaneseq
      %v194 = vshrl.u32 %v193, 7
      %v195 = vsub.s32 %v192, %v194
      %v196 = vrot.slane %v189, %v195
      %vm197 = vcmask 1044484
      %v198 = vsel %vm197, %v188, %v188
      %vm199 = vcmask 1046534
      %v200 = vsel %vm199, %v188, %v198
      %v201 = vrot.slane %v196, 7
      %vm202 = vcmask 1041409
      %v203 = vsel %vm202, %v201, %v200
      %vm204 = vcmask 1043459
      %v205 = vsel %vm204, %v201, %v203
      %vm206 = vcmask 1045509
      %v207 = vsel %vm206, %v201, %v205
      %vm208 = vcmask 1047559
      %v209 = vsel %vm208, %v201, %v207
      %v211 = vadd.f32 %v176, %v209
      %212 = vst [vmem:[#allocation2] sm:$0xf] %v211
      %v213 = vld [vmem:[#allocation3] sm:$0xf]
      %v218 = vcombine.low %v82, %v89
      %v220 = vunpack.c.l.s4 1983009808
      %v221 = vunpack.c.0.s8 %v220
      %v222 = vlaneseq
      %v223 = vshrl.u32 %v222, 7
      %v224 = vsub.s32 %v221, %v223
      %v225 = vrot.slane %v218, %v224
      %v226 = vcombine.low %v96, %v103
      %v228 = vunpack.c.l.s4 1983009808
      %v229 = vunpack.c.0.s8 %v228
      %v230 = vlaneseq
      %v231 = vshrl.u32 %v230, 7
      %v232 = vsub.s32 %v229, %v231
      %v233 = vrot.slane %v226, %v232
      %v234 = vsel %vm197, %v225, %v225
      %v235 = vsel %vm199, %v225, %v234
      %v236 = vrot.slane %v233, 7
      %v237 = vsel %vm202, %v236, %v235
      %v238 = vsel %vm204, %v236, %v237
      %v239 = vsel %vm206, %v236, %v238
      %v240 = vsel %vm208, %v236, %v239
      %v242 = vmax.f32 %v213, %v240
      %243 = vst [vmem:[#allocation3] sm:$0xf] %v242
    $region25: #{tpu_custom_call.1} parent=1 // pred_fallthru
      _
    // Predicated region
    $region26: #{tpu_custom_call.1} parent=1 // pred_check
      %p244 = pneg %p104
    $region27: #{tpu_custom_call.1} parent=1 // pred_check_branch
      %246 = sbr.rel (%p244) target = $region29
    $region28: #{tpu_custom_call.1} parent=1 // pred_region
      %v247 = vld [vmem:[#allocation2] sm:$0xf]
      %v248 = vmul.f32 %v247, 0.25
      %v249 = vld [vmem:[#allocation3] sm:$0xf]
      %v250 = vlaneseq
      %v251 = vand.u32 %v250, 127
      %v252 = vadd.s32 %v251, 128
      %v253 = vand.u32 %v251, 15
      %v254 = vand.u32 %v252, 15
      %vm255 = vcmp.ge.s32.totalorder %v251, 48
      %vm256 = vcmp.ge.s32.totalorder %v252, 48
      %vm257 = vcmp.lt.s32.totalorder %v251, 256
      %vm258 = vcmp.lt.s32.totalorder %v252, 256
      %vm259 = vmand %vm255, %vm257
      %vm260 = vmand %vm256, %vm258
      %v261 = vsel %vm259, 1.0, 0.0
      %v262 = vsel %vm260, 1.0, 0.0
      %v265 = vunpack.c.l.s4 1983009808
      %v266 = vunpack.c.0.s8 %v265
      %v267 = vlaneseq
      %v268 = vshrl.u32 %v267, 7
      %v269 = vsub.s32 %v266, %v268
      %v270 = vrot.slane %v248, %v269
      %v271 = vcombine.high %v270, %v270
      %274 = vrot.lane.b32.xlu0 %v270, 48
      %v275 = vpop.permute.xlu0 %274
      %276 = vrot.lane.b32.xlu0 %v271, 48
      %v277 = vpop.permute.xlu0 %276
      %vm278 = vcmp.lt.s32.totalorder %v251, 48
      %v279 = vsel %vm278, %v275, %v277
      %v280 = vsel %vm278, %v277, %v275
      %v283 = vunpack.c.l.s4 1983009808
      %v284 = vunpack.c.0.s8 %v283
      %v285 = vlaneseq
      %v286 = vshrl.u32 %v285, 7
      %v287 = vsub.s32 %v284, %v286
      %v288 = vrot.slane %v249, %v287
      %v289 = vcombine.high %v288, %v288
      %292 = vrot.lane.b32.xlu0 %v288, 48
      %v293 = vpop.permute.xlu0 %292
      %294 = vrot.lane.b32.xlu0 %v289, 48
      %v295 = vpop.permute.xlu0 %294
      %v296 = vsel %vm278, %v293, %v295
      %v297 = vsel %vm278, %v295, %v293
      %v298 = vmul.f32 %v280, %v261
      %v299 = vmul.f32 %v279, %v262
      %v300 = vmul.f32 %v297, %v261
      %v301 = vmul.f32 %v296, %v262
      %vm302 = vcmp.ge.s32.totalorder %v251, 32
      %vm303 = vcmp.ge.s32.totalorder %v252, 32
      %vm304 = vmand %vm302, %vm257
      %vm305 = vmand %vm303, %vm258
      %v306 = vsel %vm304, 1.0, 0.0
      %v307 = vsel %vm305, 1.0, 0.0
      %308 = vrot.lane.b32.xlu0 %v270, 32
      %v309 = vpop.permute.xlu0 %308
      %310 = vrot.lane.b32.xlu0 %v271, 32
      %v311 = vpop.permute.xlu0 %310
      %vm312 = vcmp.lt.s32.totalorder %v251, 32
      %v313 = vsel %vm312, %v309, %v311
      %v314 = vsel %vm312, %v311, %v309
      %315 = vrot.lane.b32.xlu0 %v288, 32
      %v316 = vpop.permute.xlu0 %315
      %317 = vrot.lane.b32.xlu0 %v289, 32
      %v318 = vpop.permute.xlu0 %317
      %v319 = vsel %vm312, %v316, %v318
      %v320 = vsel %vm312, %v318, %v316
      %v321 = vmul.f32 %v314, %v306
      %v322 = vmul.f32 %v313, %v307
      %v323 = vmul.f32 %v320, %v306
      %v324 = vmul.f32 %v319, %v307
      %vm325 = vcmp.ge.s32.totalorder %v251, 16
      %vm326 = vcmp.ge.s32.totalorder %v252, 16
      %vm327 = vmand %vm325, %vm257
      %vm328 = vmand %vm326, %vm258
      %v329 = vsel %vm327, 1.0, 0.0
      %v330 = vsel %vm328, 1.0, 0.0
      %331 = vrot.lane.b32.xlu0 %v270, 16
      %v332 = vpop.permute.xlu0 %331
      %333 = vrot.lane.b32.xlu0 %v271, 16
      %v334 = vpop.permute.xlu0 %333
      %vm335 = vcmp.lt.s32.totalorder %v251, 16
      %v336 = vsel %vm335, %v332, %v334
      %v337 = vsel %vm335, %v334, %v332
      %338 = vrot.lane.b32.xlu0 %v288, 16
      %v339 = vpop.permute.xlu0 %338
      %340 = vrot.lane.b32.xlu0 %v289, 16
      %v341 = vpop.permute.xlu0 %340
      %v342 = vsel %vm335, %v339, %v341
      %v343 = vsel %vm335, %v341, %v339
      %v344 = vmul.f32 %v337, %v329
      %v345 = vmul.f32 %v336, %v330
      %v346 = vmul.f32 %v343, %v329
      %v347 = vmul.f32 %v342, %v330
      %vm348 = vcmp.ge.s32.totalorder %v251, 0
      %vm349 = vcmp.ge.s32.totalorder %v252, 0
      %vm350 = vmand %vm348, %vm257
      %vm351 = vmand %vm349, %vm258
      %v352 = vsel %vm350, 1.0, 0.0
      %v353 = vsel %vm351, 1.0, 0.0
      %v356 = vcombine.low %v352, %v353
      %v358 = vunpack.c.l.s4 1983009808
      %v359 = vunpack.c.0.s8 %v358
      %v360 = vlaneseq
      %v361 = vshrl.u32 %v360, 7
      %v362 = vsub.s32 %v359, %v361
      %v363 = vrot.slane %v356, %v362
      %v365 = vmul.f32 %v248, %v363
      %v366 = vmul.f32 %v249, %v363
      %vm367 = vcmp.lt.s32.totalorder %v251, 240
      %vm368 = vcmp.lt.s32.totalorder %v252, 240
      %vm369 = vmand %vm348, %vm367
      %vm370 = vmand %vm349, %vm368
      %v371 = vsel %vm369, 1.0, 0.0
      %v372 = vsel %vm370, 1.0, 0.0
      %373 = vrot.lane.b32.xlu0 %v270, 112
      %v374 = vpop.permute.xlu0 %373
      %375 = vrot.lane.b32.xlu0 %v271, 112
      %v376 = vpop.permute.xlu0 %375
      %vm377 = vcmp.lt.s32.totalorder %v251, 112
      %v378 = vsel %vm377, %v374, %v376
      %v379 = vsel %vm377, %v376, %v374
      %380 = vrot.lane.b32.xlu0 %v288, 112
      %v381 = vpop.permute.xlu0 %380
      %382 = vrot.lane.b32.xlu0 %v289, 112
      %v383 = vpop.permute.xlu0 %382
      %v384 = vsel %vm377, %v381, %v383
      %v385 = vsel %vm377, %v383, %v381
      %v386 = vmul.f32 %v378, %v371
      %v387 = vmul.f32 %v379, %v372
      %v388 = vmul.f32 %v384, %v371
      %v389 = vmul.f32 %v385, %v372
      %vm390 = vcmp.lt.s32.totalorder %v251, 224
      %vm391 = vcmp.lt.s32.totalorder %v252, 224
      %vm392 = vmand %vm348, %vm390
      %vm393 = vmand %vm349, %vm391
      %v394 = vsel %vm392, 1.0, 0.0
      %v395 = vsel %vm393, 1.0, 0.0
      %396 = vrot.lane.b32.xlu0 %v270, 96
      %v397 = vpop.permute.xlu0 %396
      %398 = vrot.lane.b32.xlu0 %v271, 96
      %v399 = vpop.permute.xlu0 %398
      %vm400 = vcmp.lt.s32.totalorder %v251, 96
      %v401 = vsel %vm400, %v397, %v399
      %v402 = vsel %vm400, %v399, %v397
      %403 = vrot.lane.b32.xlu0 %v288, 96
      %v404 = vpop.permute.xlu0 %403
      %405 = vrot.lane.b32.xlu0 %v289, 96
      %v406 = vpop.permute.xlu0 %405
      %v407 = vsel %vm400, %v404, %v406
      %v408 = vsel %vm400, %v406, %v404
      %v409 = vmul.f32 %v401, %v394
      %v410 = vmul.f32 %v402, %v395
      %v411 = vmul.f32 %v407, %v394
      %v412 = vmul.f32 %v408, %v395
      %vm413 = vcmp.lt.s32.totalorder %v251, 208
      %vm414 = vcmp.lt.s32.totalorder %v252, 208
      %vm415 = vmand %vm348, %vm413
      %vm416 = vmand %vm349, %vm414
      %v417 = vsel %vm415, 1.0, 0.0
      %v418 = vsel %vm416, 1.0, 0.0
      %419 = vrot.lane.b32.xlu0 %v270, 80
      %v420 = vpop.permute.xlu0 %419
      %421 = vrot.lane.b32.xlu0 %v271, 80
      %v422 = vpop.permute.xlu0 %421
      %vm423 = vcmp.lt.s32.totalorder %v251, 80
      %v424 = vsel %vm423, %v420, %v422
      %v425 = vsel %vm423, %v422, %v420
      %426 = vrot.lane.b32.xlu0 %v288, 80
      %v427 = vpop.permute.xlu0 %426
      %428 = vrot.lane.b32.xlu0 %v289, 80
      %v429 = vpop.permute.xlu0 %428
      %v430 = vsel %vm423, %v427, %v429
      %v431 = vsel %vm423, %v429, %v427
      %v432 = vmul.f32 %v424, %v417
      %v433 = vmul.f32 %v425, %v418
      %v434 = vmul.f32 %v430, %v417
      %v435 = vmul.f32 %v431, %v418
      %vm436 = vcmp.ge.s32.totalorder %v253, 3
      %vm437 = vcmp.ge.s32.totalorder %v254, 3
      %vm438 = vcmp.lt.s32.totalorder %v253, 16
      %vm439 = vcmp.lt.s32.totalorder %v254, 16
      %vm440 = vmand %vm436, %vm438
      %vm441 = vmand %vm437, %vm439
      %v442 = vsel %vm440, 1.0, 0.0
      %v443 = vsel %vm441, 1.0, 0.0
      %s444 = sld [smem:[#allocation8]]
      %v445 = vstv %s444
      %v446 = vmul.f32 %v298, %v445
      %v447 = vmul.f32 %v299, %v445
      %s448 = sld [smem:[#allocation8 + $0x31]]
      %v449 = vstv %s448
      %v450 = vmul.f32 %v300, %v449
      %v451 = vmul.f32 %v301, %v449
      %v452 = vadd.f32 %v446, %v450
      %v453 = vadd.f32 %v447, %v451
      %s454 = sld [smem:[#allocation8 + $0x7]]
      %v455 = vstv %s454
      %v456 = vmul.f32 %v321, %v455
      %v457 = vmul.f32 %v322, %v455
      %v458 = vadd.f32 %v452, %v456
      %v459 = vadd.f32 %v453, %v457
      %s460 = sld [smem:[#allocation8 + $0x38]]
      %v461 = vstv %s460
      %v462 = vmul.f32 %v323, %v461
      %v463 = vmul.f32 %v324, %v461
      %v464 = vadd.f32 %v458, %v462
      %v465 = vadd.f32 %v459, %v463
      %s466 = sld [smem:[#allocation8 + $0xe]]
      %v467 = vstv %s466
      %v468 = vmul.f32 %v344, %v467
      %v469 = vmul.f32 %v345, %v467
      %v470 = vadd.f32 %v464, %v468
      %v471 = vadd.f32 %v465, %v469
      %s472 = sld [smem:[#allocation8 + $0x3f]]
      %v473 = vstv %s472
      %v474 = vmul.f32 %v346, %v473
      %v475 = vmul.f32 %v347, %v473
      %v476 = vadd.f32 %v470, %v474
      %v477 = vadd.f32 %v471, %v475
      %s478 = sld [smem:[#allocation8 + $0x15]]
      %v479 = vstv %s478
      %v480 = vmul.f32 %v365, %v479
      %v483 = vunpack.c.l.s4 1983009808
      %v484 = vunpack.c.0.s8 %v483
      %v485 = vlaneseq
      %v486 = vshrl.u32 %v485, 7
      %v487 = vsub.s32 %v484, %v486
      %v488 = vrot.slane %v480, %v487
      %v489 = vcombine.high %v488, %v488
      %v492 = vadd.f32 %v476, %v488
      %v493 = vadd.f32 %v477, %v489
      %s494 = sld [smem:[#allocation8 + $0x46]]
      %v495 = vstv %s494
      %v496 = vmul.f32 %v366, %v495
      %v499 = vunpack.c.l.s4 1983009808
      %v500 = vunpack.c.0.s8 %v499
      %v501 = vlaneseq
      %v502 = vshrl.u32 %v501, 7
      %v503 = vsub.s32 %v500, %v502
      %v504 = vrot.slane %v496, %v503
      %v505 = vcombine.high %v504, %v504
      %v508 = vadd.f32 %v492, %v504
      %v509 = vadd.f32 %v493, %v505
      %s510 = sld [smem:[#allocation8 + $0x1c]]
      %v511 = vstv %s510
      %v512 = vmul.f32 %v386, %v511
      %v513 = vmul.f32 %v387, %v511
      %v514 = vadd.f32 %v508, %v512
      %v515 = vadd.f32 %v509, %v513
      %s516 = sld [smem:[#allocation8 + $0x4d]]
      %v517 = vstv %s516
      %v518 = vmul.f32 %v388, %v517
      %v519 = vmul.f32 %v389, %v517
      %v520 = vadd.f32 %v514, %v518
      %v521 = vadd.f32 %v515, %v519
      %s522 = sld [smem:[#allocation8 + $0x23]]
      %v523 = vstv %s522
      %v524 = vmul.f32 %v409, %v523
      %v525 = vmul.f32 %v410, %v523
      %v526 = vadd.f32 %v520, %v524
      %v527 = vadd.f32 %v521, %v525
      %s528 = sld [smem:[#allocation8 + $0x54]]
      %v529 = vstv %s528
      %v530 = vmul.f32 %v411, %v529
      %v531 = vmul.f32 %v412, %v529
      %v532 = vadd.f32 %v526, %v530
      %v533 = vadd.f32 %v527, %v531
      %s534 = sld [smem:[#allocation8 + $0x2a]]
      %v535 = vstv %s534
      %v536 = vmul.f32 %v432, %v535
      %v537 = vmul.f32 %v433, %v535
      %v538 = vadd.f32 %v532, %v536
      %v539 = vadd.f32 %v533, %v537
      %s540 = sld [smem:[#allocation8 + $0x5b]]
      %v541 = vstv %s540
      %v542 = vmul.f32 %v434, %v541
      %v543 = vmul.f32 %v435, %v541
      %v544 = vadd.f32 %v538, %v542
      %v545 = vadd.f32 %v539, %v543
      %546 = vrot.lane.b32.xlu0 %v544, 3
      %v547 = vpop.permute.xlu0 %546
      %548 = vrot.lane.b32.xlu0 %v545, 3
      %v549 = vpop.permute.xlu0 %548
      %vm550 = vcmp.lt.s32.totalorder %v251, 3
      %v551 = vsel %vm550, %v547, %v549
      %v552 = vsel %vm550, %v549, %v547
      %v553 = vmul.f32 %v552, %v442
      %v554 = vmul.f32 %v551, %v443
      %v555 = vadd.f32 %v553, 0.0
      %v556 = vadd.f32 %v554, 0.0
      %vm557 = vcmp.ge.s32.totalorder %v253, 2
      %vm558 = vcmp.ge.s32.totalorder %v254, 2
      %vm559 = vmand %vm557, %vm438
      %vm560 = vmand %vm558, %vm439
      %v561 = vsel %vm559, 1.0, 0.0
      %v562 = vsel %vm560, 1.0, 0.0
      %s563 = sld [smem:[#allocation8 + $0x1]]
      %v564 = vstv %s563
      %v565 = vmul.f32 %v298, %v564
      %v566 = vmul.f32 %v299, %v564
      %s567 = sld [smem:[#allocation8 + $0x32]]
      %v568 = vstv %s567
      %v569 = vmul.f32 %v300, %v568
      %v570 = vmul.f32 %v301, %v568
      %v571 = vadd.f32 %v565, %v569
      %v572 = vadd.f32 %v566, %v570
      %s573 = sld [smem:[#allocation8 + $0x8]]
      %v574 = vstv %s573
      %v575 = vmul.f32 %v321, %v574
      %v576 = vmul.f32 %v322, %v574
      %v577 = vadd.f32 %v571, %v575
      %v578 = vadd.f32 %v572, %v576
      %s579 = sld [smem:[#allocation8 + $0x39]]
      %v580 = vstv %s579
      %v581 = vmul.f32 %v323, %v580
      %v582 = vmul.f32 %v324, %v580
      %v583 = vadd.f32 %v577, %v581
      %v584 = vadd.f32 %v578, %v582
      %s585 = sld [smem:[#allocation8 + $0xf]]
      %v586 = vstv %s585
      %v587 = vmul.f32 %v344, %v586
      %v588 = vmul.f32 %v345, %v586
      %v589 = vadd.f32 %v583, %v587
      %v590 = vadd.f32 %v584, %v588
      %s591 = sld [smem:[#allocation8 + $0x40]]
      %v592 = vstv %s591
      %v593 = vmul.f32 %v346, %v592
      %v594 = vmul.f32 %v347, %v592
      %v595 = vadd.f32 %v589, %v593
      %v596 = vadd.f32 %v590, %v594
      %s597 = sld [smem:[#allocation8 + $0x16]]
      %v598 = vstv %s597
      %v599 = vmul.f32 %v365, %v598
      %v602 = vunpack.c.l.s4 1983009808
      %v603 = vunpack.c.0.s8 %v602
      %v604 = vlaneseq
      %v605 = vshrl.u32 %v604, 7
      %v606 = vsub.s32 %v603, %v605
      %v607 = vrot.slane %v599, %v606
      %v608 = vcombine.high %v607, %v607
      %v611 = vadd.f32 %v595, %v607
      %v612 = vadd.f32 %v596, %v608
      %s613 = sld [smem:[#allocation8 + $0x47]]
      %v614 = vstv %s613
      %v615 = vmul.f32 %v366, %v614
      %v618 = vunpack.c.l.s4 1983009808
      %v619 = vunpack.c.0.s8 %v618
      %v620 = vlaneseq
      %v621 = vshrl.u32 %v620, 7
      %v622 = vsub.s32 %v619, %v621
      %v623 = vrot.slane %v615, %v622
      %v624 = vcombine.high %v623, %v623
      %v627 = vadd.f32 %v611, %v623
      %v628 = vadd.f32 %v612, %v624
      %s629 = sld [smem:[#allocation8 + $0x1d]]
      %v630 = vstv %s629
      %v631 = vmul.f32 %v386, %v630
      %v632 = vmul.f32 %v387, %v630
      %v633 = vadd.f32 %v627, %v631
      %v634 = vadd.f32 %v628, %v632
      %s635 = sld [smem:[#allocation8 + $0x4e]]
      %v636 = vstv %s635
      %v637 = vmul.f32 %v388, %v636
      %v638 = vmul.f32 %v389, %v636
      %v639 = vadd.f32 %v633, %v637
      %v640 = vadd.f32 %v634, %v638
      %s641 = sld [smem:[#allocation8 + $0x24]]
      %v642 = vstv %s641
      %v643 = vmul.f32 %v409, %v642
      %v644 = vmul.f32 %v410, %v642
      %v645 = vadd.f32 %v639, %v643
      %v646 = vadd.f32 %v640, %v644
      %s647 = sld [smem:[#allocation8 + $0x55]]
      %v648 = vstv %s647
      %v649 = vmul.f32 %v411, %v648
      %v650 = vmul.f32 %v412, %v648
      %v651 = vadd.f32 %v645, %v649
      %v652 = vadd.f32 %v646, %v650
      %s653 = sld [smem:[#allocation8 + $0x2b]]
      %v654 = vstv %s653
      %v655 = vmul.f32 %v432, %v654
      %v656 = vmul.f32 %v433, %v654
      %v657 = vadd.f32 %v651, %v655
      %v658 = vadd.f32 %v652, %v656
      %s659 = sld [smem:[#allocation8 + $0x5c]]
      %v660 = vstv %s659
      %v661 = vmul.f32 %v434, %v660
      %v662 = vmul.f32 %v435, %v660
      %v663 = vadd.f32 %v657, %v661
      %v664 = vadd.f32 %v658, %v662
      %665 = vrot.lane.b32.xlu0 %v663, 2
      %v666 = vpop.permute.xlu0 %665
      %667 = vrot.lane.b32.xlu0 %v664, 2
      %v668 = vpop.permute.xlu0 %667
      %vm669 = vcmp.lt.s32.totalorder %v251, 2
      %v670 = vsel %vm669, %v666, %v668
      %v671 = vsel %vm669, %v668, %v666
      %v672 = vmul.f32 %v671, %v561
      %v673 = vmul.f32 %v670, %v562
      %v674 = vadd.f32 %v672, 0.0
      %v675 = vadd.f32 %v673, 0.0
      %vm676 = vcmp.ge.s32.totalorder %v253, 1
      %vm677 = vcmp.ge.s32.totalorder %v254, 1
      %vm678 = vmand %vm676, %vm438
      %vm679 = vmand %vm677, %vm439
      %v680 = vsel %vm678, 1.0, 0.0
      %v681 = vsel %vm679, 1.0, 0.0
      %s682 = sld [smem:[#allocation8 + $0x2]]
      %v683 = vstv %s682
      %v684 = vmul.f32 %v298, %v683
      %v685 = vmul.f32 %v299, %v683
      %s686 = sld [smem:[#allocation8 + $0x33]]
      %v687 = vstv %s686
      %v688 = vmul.f32 %v300, %v687
      %v689 = vmul.f32 %v301, %v687
      %v690 = vadd.f32 %v684, %v688
      %v691 = vadd.f32 %v685, %v689
      %s692 = sld [smem:[#allocation8 + $0x9]]
      %v693 = vstv %s692
      %v694 = vmul.f32 %v321, %v693
      %v695 = vmul.f32 %v322, %v693
      %v696 = vadd.f32 %v690, %v694
      %v697 = vadd.f32 %v691, %v695
      %s698 = sld [smem:[#allocation8 + $0x3a]]
      %v699 = vstv %s698
      %v700 = vmul.f32 %v323, %v699
      %v701 = vmul.f32 %v324, %v699
      %v702 = vadd.f32 %v696, %v700
      %v703 = vadd.f32 %v697, %v701
      %s704 = sld [smem:[#allocation8 + $0x10]]
      %v705 = vstv %s704
      %v706 = vmul.f32 %v344, %v705
      %v707 = vmul.f32 %v345, %v705
      %v708 = vadd.f32 %v702, %v706
      %v709 = vadd.f32 %v703, %v707
      %s710 = sld [smem:[#allocation8 + $0x41]]
      %v711 = vstv %s710
      %v712 = vmul.f32 %v346, %v711
      %v713 = vmul.f32 %v347, %v711
      %v714 = vadd.f32 %v708, %v712
      %v715 = vadd.f32 %v709, %v713
      %s716 = sld [smem:[#allocation8 + $0x17]]
      %v717 = vstv %s716
      %v718 = vmul.f32 %v365, %v717
      %v721 = vunpack.c.l.s4 1983009808
      %v722 = vunpack.c.0.s8 %v721
      %v723 = vlaneseq
      %v724 = vshrl.u32 %v723, 7
      %v725 = vsub.s32 %v722, %v724
      %v726 = vrot.slane %v718, %v725
      %v727 = vcombine.high %v726, %v726
      %v730 = vadd.f32 %v714, %v726
      %v731 = vadd.f32 %v715, %v727
      %s732 = sld [smem:[#allocation8 + $0x48]]
      %v733 = vstv %s732
      %v734 = vmul.f32 %v366, %v733
      %v737 = vunpack.c.l.s4 1983009808
      %v738 = vunpack.c.0.s8 %v737
      %v739 = vlaneseq
      %v740 = vshrl.u32 %v739, 7
      %v741 = vsub.s32 %v738, %v740
      %v742 = vrot.slane %v734, %v741
      %v743 = vcombine.high %v742, %v742
      %v746 = vadd.f32 %v730, %v742
      %v747 = vadd.f32 %v731, %v743
      %s748 = sld [smem:[#allocation8 + $0x1e]]
      %v749 = vstv %s748
      %v750 = vmul.f32 %v386, %v749
      %v751 = vmul.f32 %v387, %v749
      %v752 = vadd.f32 %v746, %v750
      %v753 = vadd.f32 %v747, %v751
      %s754 = sld [smem:[#allocation8 + $0x4f]]
      %v755 = vstv %s754
      %v756 = vmul.f32 %v388, %v755
      %v757 = vmul.f32 %v389, %v755
      %v758 = vadd.f32 %v752, %v756
      %v759 = vadd.f32 %v753, %v757
      %s760 = sld [smem:[#allocation8 + $0x25]]
      %v761 = vstv %s760
      %v762 = vmul.f32 %v409, %v761
      %v763 = vmul.f32 %v410, %v761
      %v764 = vadd.f32 %v758, %v762
      %v765 = vadd.f32 %v759, %v763
      %s766 = sld [smem:[#allocation8 + $0x56]]
      %v767 = vstv %s766
      %v768 = vmul.f32 %v411, %v767
      %v769 = vmul.f32 %v412, %v767
      %v770 = vadd.f32 %v764, %v768
      %v771 = vadd.f32 %v765, %v769
      %s772 = sld [smem:[#allocation8 + $0x2c]]
      %v773 = vstv %s772
      %v774 = vmul.f32 %v432, %v773
      %v775 = vmul.f32 %v433, %v773
      %v776 = vadd.f32 %v770, %v774
      %v777 = vadd.f32 %v771, %v775
      %s778 = sld [smem:[#allocation8 + $0x5d]]
      %v779 = vstv %s778
      %v780 = vmul.f32 %v434, %v779
      %v781 = vmul.f32 %v435, %v779
      %v782 = vadd.f32 %v776, %v780
      %v783 = vadd.f32 %v777, %v781
      %784 = vrot.lane.b32.xlu0 %v782, 1
      %v785 = vpop.permute.xlu0 %784
      %786 = vrot.lane.b32.xlu0 %v783, 1
      %v787 = vpop.permute.xlu0 %786
      %vm788 = vcmp.lt.s32.totalorder %v251, 1
      %v789 = vsel %vm788, %v785, %v787
      %v790 = vsel %vm788, %v787, %v785
      %v791 = vmul.f32 %v790, %v680
      %v792 = vmul.f32 %v789, %v681
      %v793 = vadd.f32 %v555, %v791
      %v794 = vadd.f32 %v556, %v792
      %vm795 = vcmp.ge.s32.totalorder %v253, 0
      %vm796 = vcmp.ge.s32.totalorder %v254, 0
      %vm797 = vmand %vm795, %vm438
      %vm798 = vmand %vm796, %vm439
      %v799 = vsel %vm797, 1.0, 0.0
      %v800 = vsel %vm798, 1.0, 0.0
      %s801 = sld [smem:[#allocation8 + $0x3]]
      %v802 = vstv %s801
      %v803 = vmul.f32 %v298, %v802
      %v804 = vmul.f32 %v299, %v802
      %s805 = sld [smem:[#allocation8 + $0x34]]
      %v806 = vstv %s805
      %v807 = vmul.f32 %v300, %v806
      %v808 = vmul.f32 %v301, %v806
      %v809 = vadd.f32 %v803, %v807
      %v810 = vadd.f32 %v804, %v808
      %s811 = sld [smem:[#allocation8 + $0xa]]
      %v812 = vstv %s811
      %v813 = vmul.f32 %v321, %v812
      %v814 = vmul.f32 %v322, %v812
      %v815 = vadd.f32 %v809, %v813
      %v816 = vadd.f32 %v810, %v814
      %s817 = sld [smem:[#allocation8 + $0x3b]]
      %v818 = vstv %s817
      %v819 = vmul.f32 %v323, %v818
      %v820 = vmul.f32 %v324, %v818
      %v821 = vadd.f32 %v815, %v819
      %v822 = vadd.f32 %v816, %v820
      %s823 = sld [smem:[#allocation8 + $0x11]]
      %v824 = vstv %s823
      %v825 = vmul.f32 %v344, %v824
      %v826 = vmul.f32 %v345, %v824
      %v827 = vadd.f32 %v821, %v825
      %v828 = vadd.f32 %v822, %v826
      %s829 = sld [smem:[#allocation8 + $0x42]]
      %v830 = vstv %s829
      %v831 = vmul.f32 %v346, %v830
      %v832 = vmul.f32 %v347, %v830
      %v833 = vadd.f32 %v827, %v831
      %v834 = vadd.f32 %v828, %v832
      %s835 = sld [smem:[#allocation8 + $0x18]]
      %v836 = vstv %s835
      %v837 = vmul.f32 %v365, %v836
      %v840 = vunpack.c.l.s4 1983009808
      %v841 = vunpack.c.0.s8 %v840
      %v842 = vlaneseq
      %v843 = vshrl.u32 %v842, 7
      %v844 = vsub.s32 %v841, %v843
      %v845 = vrot.slane %v837, %v844
      %v846 = vcombine.high %v845, %v845
      %v849 = vadd.f32 %v833, %v845
      %v850 = vadd.f32 %v834, %v846
      %s851 = sld [smem:[#allocation8 + $0x49]]
      %v852 = vstv %s851
      %v853 = vmul.f32 %v366, %v852
      %v856 = vunpack.c.l.s4 1983009808
      %v857 = vunpack.c.0.s8 %v856
      %v858 = vlaneseq
      %v859 = vshrl.u32 %v858, 7
      %v860 = vsub.s32 %v857, %v859
      %v861 = vrot.slane %v853, %v860
      %v862 = vcombine.high %v861, %v861
      %v865 = vadd.f32 %v849, %v861
      %v866 = vadd.f32 %v850, %v862
      %s867 = sld [smem:[#allocation8 + $0x1f]]
      %v868 = vstv %s867
      %v869 = vmul.f32 %v386, %v868
      %v870 = vmul.f32 %v387, %v868
      %v871 = vadd.f32 %v865, %v869
      %v872 = vadd.f32 %v866, %v870
      %s873 = sld [smem:[#allocation8 + $0x50]]
      %v874 = vstv %s873
      %v875 = vmul.f32 %v388, %v874
      %v876 = vmul.f32 %v389, %v874
      %v877 = vadd.f32 %v871, %v875
      %v878 = vadd.f32 %v872, %v876
      %s879 = sld [smem:[#allocation8 + $0x26]]
      %v880 = vstv %s879
      %v881 = vmul.f32 %v409, %v880
      %v882 = vmul.f32 %v410, %v880
      %v883 = vadd.f32 %v877, %v881
      %v884 = vadd.f32 %v878, %v882
      %s885 = sld [smem:[#allocation8 + $0x57]]
      %v886 = vstv %s885
      %v887 = vmul.f32 %v411, %v886
      %v888 = vmul.f32 %v412, %v886
      %v889 = vadd.f32 %v883, %v887
      %v890 = vadd.f32 %v884, %v888
      %s891 = sld [smem:[#allocation8 + $0x2d]]
      %v892 = vstv %s891
      %v893 = vmul.f32 %v432, %v892
      %v894 = vmul.f32 %v433, %v892
      %v895 = vadd.f32 %v889, %v893
      %v896 = vadd.f32 %v890, %v894
      %s897 = sld [smem:[#allocation8 + $0x5e]]
      %v898 = vstv %s897
      %v899 = vmul.f32 %v434, %v898
      %v900 = vmul.f32 %v435, %v898
      %v901 = vadd.f32 %v895, %v899
      %v902 = vadd.f32 %v896, %v900
      %v903 = vmul.f32 %v901, %v799
      %v904 = vmul.f32 %v902, %v800
      %v905 = vadd.f32 %v674, %v903
      %v906 = vadd.f32 %v675, %v904
      %vm907 = vcmp.lt.s32.totalorder %v253, 15
      %vm908 = vcmp.lt.s32.totalorder %v254, 15
      %vm909 = vmand %vm795, %vm907
      %vm910 = vmand %vm796, %vm908
      %v911 = vsel %vm909, 1.0, 0.0
      %v912 = vsel %vm910, 1.0, 0.0
      %s913 = sld [smem:[#allocation8 + $0x4]]
      %v914 = vstv %s913
      %v915 = vmul.f32 %v298, %v914
      %v916 = vmul.f32 %v299, %v914
      %s917 = sld [smem:[#allocation8 + $0x35]]
      %v918 = vstv %s917
      %v919 = vmul.f32 %v300, %v918
      %v920 = vmul.f32 %v301, %v918
      %v921 = vadd.f32 %v915, %v919
      %v922 = vadd.f32 %v916, %v920
      %s923 = sld [smem:[#allocation8 + $0xb]]
      %v924 = vstv %s923
      %v925 = vmul.f32 %v321, %v924
      %v926 = vmul.f32 %v322, %v924
      %v927 = vadd.f32 %v921, %v925
      %v928 = vadd.f32 %v922, %v926
      %s929 = sld [smem:[#allocation8 + $0x3c]]
      %v930 = vstv %s929
      %v931 = vmul.f32 %v323, %v930
      %v932 = vmul.f32 %v324, %v930
      %v933 = vadd.f32 %v927, %v931
      %v934 = vadd.f32 %v928, %v932
      %s935 = sld [smem:[#allocation8 + $0x12]]
      %v936 = vstv %s935
      %v937 = vmul.f32 %v344, %v936
      %v938 = vmul.f32 %v345, %v936
      %v939 = vadd.f32 %v933, %v937
      %v940 = vadd.f32 %v934, %v938
      %s941 = sld [smem:[#allocation8 + $0x43]]
      %v942 = vstv %s941
      %v943 = vmul.f32 %v346, %v942
      %v944 = vmul.f32 %v347, %v942
      %v945 = vadd.f32 %v939, %v943
      %v946 = vadd.f32 %v940, %v944
      %s947 = sld [smem:[#allocation8 + $0x19]]
      %v948 = vstv %s947
      %v949 = vmul.f32 %v365, %v948
      %v952 = vunpack.c.l.s4 1983009808
      %v953 = vunpack.c.0.s8 %v952
      %v954 = vlaneseq
      %v955 = vshrl.u32 %v954, 7
      %v956 = vsub.s32 %v953, %v955
      %v957 = vrot.slane %v949, %v956
      %v958 = vcombine.high %v957, %v957
      %v961 = vadd.f32 %v945, %v957
      %v962 = vadd.f32 %v946, %v958
      %s963 = sld [smem:[#allocation8 + $0x4a]]
      %v964 = vstv %s963
      %v965 = vmul.f32 %v366, %v964
      %v968 = vunpack.c.l.s4 1983009808
      %v969 = vunpack.c.0.s8 %v968
      %v970 = vlaneseq
      %v971 = vshrl.u32 %v970, 7
      %v972 = vsub.s32 %v969, %v971
      %v973 = vrot.slane %v965, %v972
      %v974 = vcombine.high %v973, %v973
      %v977 = vadd.f32 %v961, %v973
      %v978 = vadd.f32 %v962, %v974
      %s979 = sld [smem:[#allocation8 + $0x20]]
      %v980 = vstv %s979
      %v981 = vmul.f32 %v386, %v980
      %v982 = vmul.f32 %v387, %v980
      %v983 = vadd.f32 %v977, %v981
      %v984 = vadd.f32 %v978, %v982
      %s985 = sld [smem:[#allocation8 + $0x51]]
      %v986 = vstv %s985
      %v987 = vmul.f32 %v388, %v986
      %v988 = vmul.f32 %v389, %v986
      %v989 = vadd.f32 %v983, %v987
      %v990 = vadd.f32 %v984, %v988
      %s991 = sld [smem:[#allocation8 + $0x27]]
      %v992 = vstv %s991
      %v993 = vmul.f32 %v409, %v992
      %v994 = vmul.f32 %v410, %v992
      %v995 = vadd.f32 %v989, %v993
      %v996 = vadd.f32 %v990, %v994
      %s997 = sld [smem:[#allocation8 + $0x58]]
      %v998 = vstv %s997
      %v999 = vmul.f32 %v411, %v998
      %v1000 = vmul.f32 %v412, %v998
      %v1001 = vadd.f32 %v995, %v999
      %v1002 = vadd.f32 %v996, %v1000
      %s1003 = sld [smem:[#allocation8 + $0x2e]]
      %v1004 = vstv %s1003
      %v1005 = vmul.f32 %v432, %v1004
      %v1006 = vmul.f32 %v433, %v1004
      %v1007 = vadd.f32 %v1001, %v1005
      %v1008 = vadd.f32 %v1002, %v1006
      %s1009 = sld [smem:[#allocation8 + $0x5f]]
      %v1010 = vstv %s1009
      %v1011 = vmul.f32 %v434, %v1010
      %v1012 = vmul.f32 %v435, %v1010
      %v1013 = vadd.f32 %v1007, %v1011
      %v1014 = vadd.f32 %v1008, %v1012
      %1015 = vrot.lane.b32.xlu0 %v1013, 127
      %v1016 = vpop.permute.xlu0 %1015
      %1017 = vrot.lane.b32.xlu0 %v1014, 127
      %v1018 = vpop.permute.xlu0 %1017
      %vm1019 = vcmp.lt.s32.totalorder %v251, 127
      %v1020 = vsel %vm1019, %v1016, %v1018
      %v1021 = vsel %vm1019, %v1018, %v1016
      %v1022 = vmul.f32 %v1020, %v911
      %v1023 = vmul.f32 %v1021, %v912
      %v1024 = vadd.f32 %v793, %v1022
      %v1025 = vadd.f32 %v794, %v1023
      %vm1026 = vcmp.lt.s32.totalorder %v253, 14
      %vm1027 = vcmp.lt.s32.totalorder %v254, 14
      %vm1028 = vmand %vm795, %vm1026
      %vm1029 = vmand %vm796, %vm1027
      %v1030 = vsel %vm1028, 1.0, 0.0
      %v1031 = vsel %vm1029, 1.0, 0.0
      %s1032 = sld [smem:[#allocation8 + $0x5]]
      %v1033 = vstv %s1032
      %v1034 = vmul.f32 %v298, %v1033
      %v1035 = vmul.f32 %v299, %v1033
      %s1036 = sld [smem:[#allocation8 + $0x36]]
      %v1037 = vstv %s1036
      %v1038 = vmul.f32 %v300, %v1037
      %v1039 = vmul.f32 %v301, %v1037
      %v1040 = vadd.f32 %v1034, %v1038
      %v1041 = vadd.f32 %v1035, %v1039
      %s1042 = sld [smem:[#allocation8 + $0xc]]
      %v1043 = vstv %s1042
      %v1044 = vmul.f32 %v321, %v1043
      %v1045 = vmul.f32 %v322, %v1043
      %v1046 = vadd.f32 %v1040, %v1044
      %v1047 = vadd.f32 %v1041, %v1045
      %s1048 = sld [smem:[#allocation8 + $0x3d]]
      %v1049 = vstv %s1048
      %v1050 = vmul.f32 %v323, %v1049
      %v1051 = vmul.f32 %v324, %v1049
      %v1052 = vadd.f32 %v1046, %v1050
      %v1053 = vadd.f32 %v1047, %v1051
      %s1054 = sld [smem:[#allocation8 + $0x13]]
      %v1055 = vstv %s1054
      %v1056 = vmul.f32 %v344, %v1055
      %v1057 = vmul.f32 %v345, %v1055
      %v1058 = vadd.f32 %v1052, %v1056
      %v1059 = vadd.f32 %v1053, %v1057
      %s1060 = sld [smem:[#allocation8 + $0x44]]
      %v1061 = vstv %s1060
      %v1062 = vmul.f32 %v346, %v1061
      %v1063 = vmul.f32 %v347, %v1061
      %v1064 = vadd.f32 %v1058, %v1062
      %v1065 = vadd.f32 %v1059, %v1063
      %s1066 = sld [smem:[#allocation8 + $0x1a]]
      %v1067 = vstv %s1066
      %v1068 = vmul.f32 %v365, %v1067
      %v1071 = vunpack.c.l.s4 1983009808
      %v1072 = vunpack.c.0.s8 %v1071
      %v1073 = vlaneseq
      %v1074 = vshrl.u32 %v1073, 7
      %v1075 = vsub.s32 %v1072, %v1074
      %v1076 = vrot.slane %v1068, %v1075
      %v1077 = vcombine.high %v1076, %v1076
      %v1080 = vadd.f32 %v1064, %v1076
      %v1081 = vadd.f32 %v1065, %v1077
      %s1082 = sld [smem:[#allocation8 + $0x4b]]
      %v1083 = vstv %s1082
      %v1084 = vmul.f32 %v366, %v1083
      %v1087 = vunpack.c.l.s4 1983009808
      %v1088 = vunpack.c.0.s8 %v1087
      %v1089 = vlaneseq
      %v1090 = vshrl.u32 %v1089, 7
      %v1091 = vsub.s32 %v1088, %v1090
      %v1092 = vrot.slane %v1084, %v1091
      %v1093 = vcombine.high %v1092, %v1092
      %v1096 = vadd.f32 %v1080, %v1092
      %v1097 = vadd.f32 %v1081, %v1093
      %s1098 = sld [smem:[#allocation8 + $0x21]]
      %v1099 = vstv %s1098
      %v1100 = vmul.f32 %v386, %v1099
      %v1101 = vmul.f32 %v387, %v1099
      %v1102 = vadd.f32 %v1096, %v1100
      %v1103 = vadd.f32 %v1097, %v1101
      %s1104 = sld [smem:[#allocation8 + $0x52]]
      %v1105 = vstv %s1104
      %v1106 = vmul.f32 %v388, %v1105
      %v1107 = vmul.f32 %v389, %v1105
      %v1108 = vadd.f32 %v1102, %v1106
      %v1109 = vadd.f32 %v1103, %v1107
      %s1110 = sld [smem:[#allocation8 + $0x28]]
      %v1111 = vstv %s1110
      %v1112 = vmul.f32 %v409, %v1111
      %v1113 = vmul.f32 %v410, %v1111
      %v1114 = vadd.f32 %v1108, %v1112
      %v1115 = vadd.f32 %v1109, %v1113
      %s1116 = sld [smem:[#allocation8 + $0x59]]
      %v1117 = vstv %s1116
      %v1118 = vmul.f32 %v411, %v1117
      %v1119 = vmul.f32 %v412, %v1117
      %v1120 = vadd.f32 %v1114, %v1118
      %v1121 = vadd.f32 %v1115, %v1119
      %s1122 = sld [smem:[#allocation8 + $0x2f]]
      %v1123 = vstv %s1122
      %v1124 = vmul.f32 %v432, %v1123
      %v1125 = vmul.f32 %v433, %v1123
      %v1126 = vadd.f32 %v1120, %v1124
      %v1127 = vadd.f32 %v1121, %v1125
      %s1128 = sld [smem:[#allocation8 + $0x60]]
      %v1129 = vstv %s1128
      %v1130 = vmul.f32 %v434, %v1129
      %v1131 = vmul.f32 %v435, %v1129
      %v1132 = vadd.f32 %v1126, %v1130
      %v1133 = vadd.f32 %v1127, %v1131
      %1134 = vrot.lane.b32.xlu0 %v1132, 126
      %v1135 = vpop.permute.xlu0 %1134
      %1136 = vrot.lane.b32.xlu0 %v1133, 126
      %v1137 = vpop.permute.xlu0 %1136
      %vm1138 = vcmp.lt.s32.totalorder %v251, 126
      %v1139 = vsel %vm1138, %v1135, %v1137
      %v1140 = vsel %vm1138, %v1137, %v1135
      %v1141 = vmul.f32 %v1139, %v1030
      %v1142 = vmul.f32 %v1140, %v1031
      %v1143 = vadd.f32 %v905, %v1141
      %v1144 = vadd.f32 %v906, %v1142
      %vm1145 = vcmp.lt.s32.totalorder %v253, 13
      %vm1146 = vcmp.lt.s32.totalorder %v254, 13
      %vm1147 = vmand %vm795, %vm1145
      %vm1148 = vmand %vm796, %vm1146
      %v1149 = vsel %vm1147, 1.0, 0.0
      %v1150 = vsel %vm1148, 1.0, 0.0
      %s1151 = sld [smem:[#allocation8 + $0x6]]
      %v1152 = vstv %s1151
      %v1153 = vmul.f32 %v298, %v1152
      %v1154 = vmul.f32 %v299, %v1152
      %s1155 = sld [smem:[#allocation8 + $0x37]]
      %v1156 = vstv %s1155
      %v1157 = vmul.f32 %v300, %v1156
      %v1158 = vmul.f32 %v301, %v1156
      %v1159 = vadd.f32 %v1153, %v1157
      %v1160 = vadd.f32 %v1154, %v1158
      %s1161 = sld [smem:[#allocation8 + $0xd]]
      %v1162 = vstv %s1161
      %v1163 = vmul.f32 %v321, %v1162
      %v1164 = vmul.f32 %v322, %v1162
      %v1165 = vadd.f32 %v1159, %v1163
      %v1166 = vadd.f32 %v1160, %v1164
      %s1167 = sld [smem:[#allocation8 + $0x3e]]
      %v1168 = vstv %s1167
      %v1169 = vmul.f32 %v323, %v1168
      %v1170 = vmul.f32 %v324, %v1168
      %v1171 = vadd.f32 %v1165, %v1169
      %v1172 = vadd.f32 %v1166, %v1170
      %s1173 = sld [smem:[#allocation8 + $0x14]]
      %v1174 = vstv %s1173
      %v1175 = vmul.f32 %v344, %v1174
      %v1176 = vmul.f32 %v345, %v1174
      %v1177 = vadd.f32 %v1171, %v1175
      %v1178 = vadd.f32 %v1172, %v1176
      %s1179 = sld [smem:[#allocation8 + $0x45]]
      %v1180 = vstv %s1179
      %v1181 = vmul.f32 %v346, %v1180
      %v1182 = vmul.f32 %v347, %v1180
      %v1183 = vadd.f32 %v1177, %v1181
      %v1184 = vadd.f32 %v1178, %v1182
      %s1185 = sld [smem:[#allocation8 + $0x1b]]
      %v1186 = vstv %s1185
      %v1187 = vmul.f32 %v365, %v1186
      %v1190 = vunpack.c.l.s4 1983009808
      %v1191 = vunpack.c.0.s8 %v1190
      %v1192 = vlaneseq
      %v1193 = vshrl.u32 %v1192, 7
      %v1194 = vsub.s32 %v1191, %v1193
      %v1195 = vrot.slane %v1187, %v1194
      %v1196 = vcombine.high %v1195, %v1195
      %v1199 = vadd.f32 %v1183, %v1195
      %v1200 = vadd.f32 %v1184, %v1196
      %s1201 = sld [smem:[#allocation8 + $0x4c]]
      %v1202 = vstv %s1201
      %v1203 = vmul.f32 %v366, %v1202
      %v1206 = vunpack.c.l.s4 1983009808
      %v1207 = vunpack.c.0.s8 %v1206
      %v1208 = vlaneseq
      %v1209 = vshrl.u32 %v1208, 7
      %v1210 = vsub.s32 %v1207, %v1209
      %v1211 = vrot.slane %v1203, %v1210
      %v1212 = vcombine.high %v1211, %v1211
      %v1215 = vadd.f32 %v1199, %v1211
      %v1216 = vadd.f32 %v1200, %v1212
      %s1217 = sld [smem:[#allocation8 + $0x22]]
      %v1218 = vstv %s1217
      %v1219 = vmul.f32 %v386, %v1218
      %v1220 = vmul.f32 %v387, %v1218
      %v1221 = vadd.f32 %v1215, %v1219
      %v1222 = vadd.f32 %v1216, %v1220
      %s1223 = sld [smem:[#allocation8 + $0x53]]
      %v1224 = vstv %s1223
      %v1225 = vmul.f32 %v388, %v1224
      %v1226 = vmul.f32 %v389, %v1224
      %v1227 = vadd.f32 %v1221, %v1225
      %v1228 = vadd.f32 %v1222, %v1226
      %s1229 = sld [smem:[#allocation8 + $0x29]]
      %v1230 = vstv %s1229
      %v1231 = vmul.f32 %v409, %v1230
      %v1232 = vmul.f32 %v410, %v1230
      %v1233 = vadd.f32 %v1227, %v1231
      %v1234 = vadd.f32 %v1228, %v1232
      %s1235 = sld [smem:[#allocation8 + $0x5a]]
      %v1236 = vstv %s1235
      %v1237 = vmul.f32 %v411, %v1236
      %v1238 = vmul.f32 %v412, %v1236
      %v1239 = vadd.f32 %v1233, %v1237
      %v1240 = vadd.f32 %v1234, %v1238
      %s1241 = sld [smem:[#allocation8 + $0x30]]
      %v1242 = vstv %s1241
      %v1243 = vmul.f32 %v432, %v1242
      %v1244 = vmul.f32 %v433, %v1242
      %v1245 = vadd.f32 %v1239, %v1243
      %v1246 = vadd.f32 %v1240, %v1244
      %s1247 = sld [smem:[#allocation8 + $0x61]]
      %v1248 = vstv %s1247
      %v1249 = vmul.f32 %v434, %v1248
      %v1250 = vmul.f32 %v435, %v1248
      %v1251 = vadd.f32 %v1245, %v1249
      %v1252 = vadd.f32 %v1246, %v1250
      %1253 = vrot.lane.b32.xlu0 %v1251, 125
      %v1254 = vpop.permute.xlu0 %1253
      %1255 = vrot.lane.b32.xlu0 %v1252, 125
      %v1256 = vpop.permute.xlu0 %1255
      %vm1257 = vcmp.lt.s32.totalorder %v251, 125
      %v1258 = vsel %vm1257, %v1254, %v1256
      %v1259 = vsel %vm1257, %v1256, %v1254
      %v1260 = vmul.f32 %v1258, %v1149
      %v1261 = vmul.f32 %v1259, %v1150
      %v1262 = vadd.f32 %v1024, %v1260
      %v1263 = vadd.f32 %v1025, %v1261
      %v1264 = vadd.f32 %v1262, %v1143
      %v1265 = vadd.f32 %v1263, %v1144
      %v1266 = vxor.u32 %v1264, 2147483648
      %v1267 = vxor.u32 %v1265, 2147483648
      %v1268 = vmul.f32 %v1266, 1.442695
      %v1269 = vpow.pop %v1268
      %v1270 = vmul.f32 %v1267, 1.442695
      %v1271 = vpow.pop %v1270
      %v1272 = vadd.f32 %v1269, 1.0
      %v1273 = vadd.f32 %v1271, 1.0
      %v1274 = vrcp.pop %v1272
      %v1275 = vmul.f32 1.0, %v1274
      %v1276 = vrcp.pop %v1273
      %v1277 = vmul.f32 1.0, %v1276
      %v1280 = vcombine.low %v1275, %v1277
      %v1282 = vunpack.c.l.s4 1983009808
      %v1283 = vunpack.c.0.s8 %v1282
      %v1284 = vlaneseq
      %v1285 = vshrl.u32 %v1284, 7
      %v1286 = vsub.s32 %v1283, %v1285
      %v1287 = vrot.slane %v1280, %v1286
      %1289 = vst [vmem:[#allocation9] sm:$0xf] %v1287
    $region29: #{tpu_custom_call.1} parent=1 // pred_fallthru
      _
    // Predicated region
    $region30: #{tpu_custom_call.1} parent=1 // pred_check
      _
    $region31: #{tpu_custom_call.1} parent=1 // pred_check_branch
      %1291 = sbr.rel (0) target = $region33
    $region32: #{tpu_custom_call.1} parent=1 // pred_region
      %s1293 = ssub.s32 64, 64
      %1294 = vsyncadd [#allocation6], %s1293
      %s1296 = sshll.u32 [#allocation9], 4
      %s1297 = int_to_ptr.vmem [resolvable:$true] %s1296
      %1299 = dma.vmem_to_hbm [thread:$0]  %s1297, 64, %s2, [#allocation6]
    $region33: #{tpu_custom_call.1} parent=1 // pred_fallthru
      _
    // Predicated region
    $region34: #{tpu_custom_call.1} parent=1 // pred_check
      _
    $region35: #{tpu_custom_call.1} parent=1 // pred_check_branch
      %1301 = sbr.rel (0) target = $region37
    $region36: #{tpu_custom_call.1} parent=1 // pred_region
      %1302 = dma.done [#allocation6], 64
    $region37: #{tpu_custom_call.1} parent=1 // pred_fallthru
      _
    %1303 = vsyncpa [#allocation5], 1
    %1304 = vsyncpa [#allocation6], 1
    %1305 = vsyncpa [#allocation7], 1

</llo_original>
